<compile_context>
chip_gen: v5e
topology: v5e:2x2
jax: 0.10.0
libtpu: 0.0.40
codegen_flags: <defaults>
</compile_context>

<pallas_src>
import functools

import jax
import jax.numpy as jnp
from jax.experimental import pallas as pl
from jax.experimental.pallas import tpu as pltpu

LANE = 128
ACT_DTYPE = jnp.bfloat16   # inter-kernel activation dtype (halves HBM traffic)


def _ru(x, m):
    return (x + m - 1) // m * m


def _apply_act(y, act):
    if act is None:
        return y
    if act == "relu6":
        return jnp.clip(y, 0.0, 6.0)
    if act == "leaky":
        return jnp.where(y >= 0, y, 0.1 * y)     # nn.LeakyReLU(0.1)
    if act == "sigmoid":
        return jax.nn.sigmoid(y)
    raise ValueError(act)


# ----------------------------------------------------------------------------
# Fused matmul (MXU): act((A @ B) * scale + shift)
# ----------------------------------------------------------------------------
def _mm_kernel(a_ref, b_ref, ss_ref, o_ref, acc_ref, *, act):
    @pl.when(pl.program_id(2) == 0)
    def _():
        acc_ref[...] = jnp.zeros_like(acc_ref)

    acc_ref[...] += jnp.dot(a_ref[...], b_ref[...], preferred_element_type=jnp.float32)

    @pl.when(pl.program_id(2) == pl.num_programs(2) - 1)
    def _():
        y = acc_ref[...] * ss_ref[0:1, :] + ss_ref[1:2, :]
        o_ref[...] = _apply_act(y, act).astype(o_ref.dtype)


def pl_matmul_fused(a, b, scale=None, shift=None, act=None, out_dtype=None):
    """a: [M,K], b: [K,N] -> act((a@b)*scale + shift) (scale/shift per-column)."""
    M, K = a.shape
    _, N = b.shape
    out_dtype = out_dtype or ACT_DTYPE
    a = jnp.asarray(a, jnp.bfloat16)
    b = jnp.asarray(b, jnp.bfloat16)

    # K / N unpadded when they fit a single tile (full-dim blocks), TM = 512.
    if K <= 512:
        TK, Kp = K, K
    else:
        TK = 512
        Kp = _ru(K, TK)
    if N <= 256:
        TN, Np = N, N
    else:
        TN = 256 if N % 256 == 0 else LANE
        Np = _ru(N, TN)
    Mp0 = _ru(M, 8)
    TM = min(512, Mp0)
    Mp = _ru(Mp0, TM)

    ap = a if (Mp, Kp) == (M, K) else jnp.pad(a, ((0, Mp - M), (0, Kp - K)))
    bp = b if (Kp, Np) == (K, N) else jnp.pad(b, ((0, Kp - K), (0, Np - N)))
    sc = jnp.ones((N,), jnp.float32) if scale is None else jnp.asarray(scale, jnp.float32)
    sh = jnp.zeros((N,), jnp.float32) if shift is None else jnp.asarray(shift, jnp.float32)
    ss = jnp.stack([sc, sh])
    if Np != N:
        ss = jnp.pad(ss, ((0, 0), (0, Np - N)))

    out = pl.pallas_call(
        functools.partial(_mm_kernel, act=act),
        out_shape=jax.ShapeDtypeStruct((Mp, Np), out_dtype),
        grid=(Mp // TM, Np // TN, Kp // TK),
        in_specs=[
            pl.BlockSpec((TM, TK), lambda i, j, k: (i, k)),
            pl.BlockSpec((TK, TN), lambda i, j, k: (k, j)),
            pl.BlockSpec((2, TN), lambda i, j, k: (0, j)),
        ],
        out_specs=pl.BlockSpec((TM, TN), lambda i, j, k: (i, j)),
        scratch_shapes=[pltpu.VMEM((TM, TN), jnp.float32)],
        compiler_params=pltpu.CompilerParams(
            dimension_semantics=("parallel", "parallel", "arbitrary")),
    )(ap, bp, ss)
    if (Mp, Np) != (M, N):
        out = out[:M, :N]
    return out


# ----------------------------------------------------------------------------
# Direct dense conv (MXU): act(conv(x, w) * scale + shift)
# Taps are read as shifted unit-stride windows (no im2col HBM blowup); one
# [TH*Wo, Cin] x [Cin, TN] dot per tap into a local f32 accumulator.
# ----------------------------------------------------------------------------
def _conv_kernel(x_ref, w_ref, ss_ref, o_ref, *, K, stride, dilation, TH, Wo, act):
    t = pl.program_id(2)
    s = stride
    Cin = x_ref.shape[-1]
    TN = o_ref.shape[-1]
    acc = jnp.zeros((TH * Wo, TN), jnp.float32)
    for kh in range(K):
        for kw in range(K):
            a, b = kh * dilation, kw * dilation
            ph = (a % s) * s + (b % s)
            qh, qw = a // s, b // s
            tap = x_ref[ph, pl.ds(qh + t * TH, TH), qw:qw + Wo, :]     # (TH, Wo, Cin)
            acc = acc + jnp.dot(tap.reshape(TH * Wo, Cin), w_ref[kh * K + kw],
                                preferred_element_type=jnp.float32)
    y = acc * ss_ref[0:1, :] + ss_ref[1:2, :]
    o_ref[0] = _apply_act(y, act).astype(o_ref.dtype).reshape(TH, Wo, TN)


def pl_conv2d_direct(x, w, scale, shift, act, stride, dilation, padding):
    """x: [N,H,W,Cin], w: [Cout,Cin,K,K] -> act(conv*scale + shift) (bf16)."""
    x = jnp.asarray(x)
    N, H, W, Cin = x.shape
    Cout, K = w.shape[0], w.shape[-1]
    s = stride
    Ho = (H + 2 * padding - dilation * (K - 1) - 1) // s + 1
    Wo = (W + 2 * padding - dilation * (K - 1) - 1) // s + 1
    TH = min(8, Ho)
    Hop = _ru(Ho, TH)
    if Cout <= LANE:
        TN, Coutp = Cout, Cout
    else:
        TN, Coutp = LANE, _ru(Cout, LANE)

    Hp, Wp = H + 2 * padding, W + 2 * padding
    Hq, Wq = -(-Hp // s), -(-Wp // s)
    q_max = (dilation * (K - 1)) // s
    Hq2 = max(Hq, q_max + Hop)
    Wq2 = max(Wq, q_max + Wo)

    xp = jnp.pad(x.astype(jnp.bfloat16),
                 ((0, 0),
                  (padding, Hq2 * s - H - padding),
                  (padding, Wq2 * s - W - padding),
                  (0, 0)))
    if s == 1:
        xph = xp                                       # no phase decomposition needed
    else:
        xph = xp.reshape(N, Hq2, s, Wq2, s, Cin).transpose(0, 2, 4, 1, 3, 5)
        xph = xph.reshape(N * s * s, Hq2, Wq2, Cin)

    w_mat = jnp.transpose(jnp.asarray(w, jnp.bfloat16), (2, 3, 1, 0)).reshape(K * K, Cin, Cout)
    ss = jnp.stack([jnp.asarray(scale, jnp.float32), jnp.asarray(shift, jnp.float32)])
    if Coutp != Cout:
        w_mat = jnp.pad(w_mat, ((0, 0), (0, 0), (0, Coutp - Cout)))
        ss = jnp.pad(ss, ((0, 0), (0, Coutp - Cout)))

    # TODO(synk): at production resolutions the whole-image input block and the
    # (TH*Wo, TN) accumulator need H/W tiling with halo; fine at these sizes.
    out = pl.pallas_call(
        functools.partial(_conv_kernel, K=K, stride=s, dilation=dilation,
                          TH=TH, Wo=Wo, act=act),
        out_shape=jax.ShapeDtypeStruct((N, Hop, Wo, Coutp), ACT_DTYPE),
        grid=(N, Coutp // TN, Hop // TH),
        in_specs=[
            pl.BlockSpec((s * s, Hq2, Wq2, Cin), lambda n, c, t: (n, 0, 0, 0)),
            pl.BlockSpec((K * K, Cin, TN), lambda n, c, t: (0, 0, c)),
            pl.BlockSpec((2, TN), lambda n, c, t: (0, c)),
        ],
        out_specs=pl.BlockSpec((1, TH, Wo, TN), lambda n, c, t: (n, t, 0, c)),
        compiler_params=pltpu.CompilerParams(
            dimension_semantics=("parallel", "parallel", "parallel")),
    )(xph, w_mat, ss)
    if (Hop, Coutp) != (Ho, Cout):
        out = out[:, :Ho, :, :Cout]
    return out


def pl_conv2d_im2col(x, w, scale, shift, act, stride, dilation, padding):
    """Fallback for tiny maps (Wo % 8 != 0): im2col + fused matmul."""
    Cout, Cin, K, _ = w.shape
    N, H, W, _ = x.shape
    Ho = (H + 2 * padding - dilation * (K - 1) - 1) // stride + 1
    Wo = (W + 2 * padding - dilation * (K - 1) - 1) // stride + 1
    x = jnp.asarray(x, jnp.bfloat16)
    xp = jnp.pad(x, ((0, 0), (padding, padding), (padding, padding), (0, 0)))
    cols = []
    for kh in range(K):
        for kw in range(K):
            cols.append(xp[:, kh * dilation: kh * dilation + stride * (Ho - 1) + 1: stride,
                           kw * dilation: kw * dilation + stride * (Wo - 1) + 1: stride, :])
    patches = jnp.concatenate(cols, axis=-1).reshape(N * Ho * Wo, K * K * Cin)
    w_mat = jnp.transpose(w, (2, 3, 1, 0)).reshape(K * K * Cin, Cout)
    out = pl_matmul_fused(patches, w_mat, scale, shift, act)
    return out.reshape(N, Ho, Wo, Cout)


# ----------------------------------------------------------------------------
# Fused depthwise conv: act(dwconv(x, w) * scale + shift)
# W is tiled so the f32 accumulator stays register-resident; stride handled by
# a space-to-phase decomposition (skipped for stride 1).
# ----------------------------------------------------------------------------
def _dw_kernel(x_ref, w_ref, ss_ref, o_ref, *, K, stride, dilation, TH, TW, nW, act):
    t = pl.program_id(2)
    s = stride
    Cb = o_ref.shape[-1]
    for wc in range(nW):
        acc = jnp.zeros((TH, TW, Cb), jnp.float32)
        for kh in range(K):
            for kw in range(K):
                a, b = kh * dilation, kw * dilation
                ph = (a % s) * s + (b % s)
                qh, qw = a // s, b // s
                tap = x_ref[ph, pl.ds(qh + t * TH, TH),
                            qw + wc * TW: qw + wc * TW + TW, :]
                acc = acc + tap.astype(jnp.float32) * w_ref[kh * K + kw]
        y = acc * ss_ref[0] + ss_ref[1]
        o_ref[0, :, wc * TW:(wc + 1) * TW, :] = _apply_act(y, act).astype(o_ref.dtype)


def pl_depthwise_fused(x, w, scale, shift, act, stride, dilation, padding):
    """x: [N,H,W,C], w: [C,K,K]; returns act(dwconv*scale + shift) as bf16."""
    x = jnp.asarray(x)
    N, H, W, C = x.shape
    K = w.shape[-1]
    s = stride
    Ho = (H + 2 * padding - dilation * (K - 1) - 1) // s + 1
    Wo = (W + 2 * padding - dilation * (K - 1) - 1) // s + 1
    TH = min(8, Ho)
    Hop = _ru(Ho, TH)
    TW = Wo if Wo <= 16 else 16
    Wop = _ru(Wo, TW)
    if C <= LANE:
        Cb, Cp = C, C
    else:
        Cb, Cp = LANE, _ru(C, LANE)

    Hp, Wp = H + 2 * padding, W + 2 * padding
    Hq, Wq = -(-Hp // s), -(-Wp // s)
    q_max = (dilation * (K - 1)) // s
    Hq2 = max(Hq, q_max + Hop)
    Wq2 = max(Wq, q_max + Wop)

    xp = jnp.pad(x.astype(jnp.bfloat16),
                 ((0, 0),
                  (padding, Hq2 * s - H - padding),
                  (padding, Wq2 * s - W - padding),
                  (0, Cp - C)))
    if s == 1:
        xph = xp
    else:
        xph = xp.reshape(N, Hq2, s, Wq2, s, Cp).transpose(0, 2, 4, 1, 3, 5)
        xph = xph.reshape(N * s * s, Hq2, Wq2, Cp)

    w_flat = jnp.transpose(jnp.asarray(w, jnp.float32), (1, 2, 0)).reshape(K * K, C)
    if Cp != C:
        w_flat = jnp.pad(w_flat, ((0, 0), (0, Cp - C)))
    w_p = w_flat.reshape(K * K, 1, 1, Cp)
    ss = jnp.stack([jnp.asarray(scale, jnp.float32), jnp.asarray(shift, jnp.float32)])
    if Cp != C:
        ss = jnp.pad(ss, ((0, 0), (0, Cp - C)))
    ss = ss.reshape(2, 1, 1, Cp)

    out = pl.pallas_call(
        functools.partial(_dw_kernel, K=K, stride=s, dilation=dilation,
                          TH=TH, TW=TW, nW=Wop // TW, act=act),
        out_shape=jax.ShapeDtypeStruct((N, Hop, Wop, Cp), ACT_DTYPE),
        grid=(N, Cp // Cb, Hop // TH),
        in_specs=[
            pl.BlockSpec((s * s, Hq2, Wq2, Cb), lambda n, c, t: (n, 0, 0, c)),
            pl.BlockSpec((K * K, 1, 1, Cb), lambda n, c, t: (0, 0, 0, c)),
            pl.BlockSpec((2, 1, 1, Cb), lambda n, c, t: (0, 0, 0, c)),
        ],
        out_specs=pl.BlockSpec((1, TH, Wop, Cb), lambda n, c, t: (n, t, 0, c)),
        compiler_params=pltpu.CompilerParams(
            dimension_semantics=("parallel", "parallel", "parallel")),
    )(xph, w_p, ss)
    if (Hop, Wop, Cp) != (Ho, Wo, C):
        out = out[:, :Ho, :Wo, :C]
    return out


# ----------------------------------------------------------------------------
# Fused broadcast-aware elementwise kernel (VPU/EUP)
# ----------------------------------------------------------------------------
def pl_fuse(fn, *inputs, out_dtype=None, compute_dtype=jnp.float32):
    """Fused elementwise op over NHWC tensors.

    inputs[0] must be a full (N,H,W,C) tensor.  Other inputs may be: full
    (N,H,W,C); 1-channel mask (N,H,W,1); per-sample per-channel (N,C);
    per-channel (C,); scalar.  For C<128, tensors are packed as (N,H,W*C) so
    the output minor dim is lane-dense (no 128-lane padding).
    """
    x0 = jnp.asarray(inputs[0])
    N, H, W, C = x0.shape
    out_dtype = out_dtype or ACT_DTYPE

    def kernel(*refs):
        ins = [r[...].astype(compute_dtype) for r in refs[:-1]]
        refs[-1][...] = fn(*ins).astype(refs[-1].dtype)

    if C < LANE:
        WC = W * C
        TH = 8 if (H % 8 == 0 and H > 8) else H
        arrs, specs = [], []
        for a in inputs:
            a = jnp.asarray(a)
            if a.ndim == 4 and a.shape == (N, H, W, C):
                arr = a.reshape(N, H, WC)
                spec = pl.BlockSpec((1, TH, WC), lambda n, i: (n, i, 0))
            elif a.ndim == 4 and a.shape == (N, H, W, 1):
                arr = jnp.broadcast_to(a, (N, H, W, C)).reshape(N, H, WC)
                spec = pl.BlockSpec((1, TH, WC), lambda n, i: (n, i, 0))
            elif a.ndim == 2 and a.shape == (N, C):
                arr = jnp.tile(a[:, None, :], (1, W, 1)).reshape(N, 1, WC)
                spec = pl.BlockSpec((1, 1, WC), lambda n, i: (n, 0, 0))
            elif a.ndim == 1 and a.shape[0] == C and C != 1:
                arr = jnp.tile(a, W).reshape(1, 1, WC)
                spec = pl.BlockSpec((1, 1, WC), lambda n, i: (0, 0, 0))
            else:   # scalar
                arr = a.reshape(1, 1, 1)
                spec = pl.BlockSpec((1, 1, 1), lambda n, i: (0, 0, 0))
            arrs.append(arr)
            specs.append(spec)
        out = pl.pallas_call(
            kernel,
            out_shape=jax.ShapeDtypeStruct((N, H, WC), out_dtype),
            grid=(N, H // TH),
            in_specs=specs,
            out_specs=pl.BlockSpec((1, TH, WC), lambda n, i: (n, i, 0)),
            compiler_params=pltpu.CompilerParams(
                dimension_semantics=("parallel", "parallel")),
        )(*arrs)
        return out.reshape(N, H, W, C)

    # channel-lane layout fallback (wide channels)
    HW = H * W
    Cp = _ru(C, LANE)
    TR = min(512, _ru(HW, 8))
    HWp = _ru(HW, TR)
    arrs, specs = [], []
    for a in inputs:
        a = jnp.asarray(a)
        if a.ndim == 4 and a.shape[-1] == C and a.shape[:3] == (N, H, W):
            arr = jnp.pad(a.reshape(N, HW, C), ((0, 0), (0, HWp - HW), (0, Cp - C)))
            spec = pl.BlockSpec((1, TR, Cp), lambda n, i: (n, i, 0))
        elif a.ndim == 4 and a.shape[-1] == 1 and a.shape[:3] == (N, H, W):
            arr = jnp.pad(a.reshape(N, HW, 1), ((0, 0), (0, HWp - HW), (0, 0)))
            spec = pl.BlockSpec((1, TR, 1), lambda n, i: (n, i, 0))
        elif a.ndim == 2 and a.shape == (N, C):
            arr = jnp.pad(a.reshape(N, 1, C), ((0, 0), (0, 0), (0, Cp - C)))
            spec = pl.BlockSpec((1, 1, Cp), lambda n, i: (n, 0, 0))
        elif a.ndim == 1 and a.shape[0] == C and C != 1:
            arr = jnp.pad(a.reshape(1, 1, C), ((0, 0), (0, 0), (0, Cp - C)))
            spec = pl.BlockSpec((1, 1, Cp), lambda n, i: (0, 0, 0))
        else:
            arr = a.reshape(1, 1, 1)
            spec = pl.BlockSpec((1, 1, 1), lambda n, i: (0, 0, 0))
        arrs.append(arr)
        specs.append(spec)
    out = pl.pallas_call(
        kernel,
        out_shape=jax.ShapeDtypeStruct((N, HWp, Cp), out_dtype),
        grid=(N, HWp // TR),
        in_specs=specs,
        out_specs=pl.BlockSpec((1, TR, Cp), lambda n, i: (n, i, 0)),
        compiler_params=pltpu.CompilerParams(
            dimension_semantics=("parallel", "parallel")),
    )(*arrs)
    return out[:, :HW, :C].reshape(N, H, W, C)


# ----------------------------------------------------------------------------
# Conv dispatcher (bias / BN / activation folded into the kernel epilogue)
# ----------------------------------------------------------------------------
def conv_apply(p, x, stride=1, dilation=1, scale=None, shift=None, act=None):
    w, b, groups = p["w"], p["b"], p["groups"]
    Cout = w.shape[0]
    K = w.shape[-1]
    padding = (stride - 1 + dilation * (K - 1)) // 2   # same formula as torch module
    scale_v = jnp.ones((Cout,), jnp.float32) if scale is None else jnp.asarray(scale, jnp.float32)
    shift_v = jnp.zeros((Cout,), jnp.float32) if shift is None else jnp.asarray(shift, jnp.float32)
    if b is not None:
        shift_v = shift_v + jnp.asarray(b, jnp.float32) * scale_v
    if groups == 1:
        if K == 1 and stride == 1 and padding == 0:
            N, H, W, Cin = x.shape
            out = pl_matmul_fused(jnp.asarray(x).reshape(N * H * W, Cin),
                                  w.reshape(Cout, -1).T, scale_v, shift_v, act)
            return out.reshape(N, H, W, Cout)
        Wo = (x.shape[2] + 2 * padding - dilation * (K - 1) - 1) // stride + 1
        if Wo % 8 == 0:
            return pl_conv2d_direct(x, w, scale_v, shift_v, act, stride, dilation, padding)
        # TODO(synk): tiny maps (Wo%8!=0, i.e. 2x2/4x4) use the im2col fallback.
        return pl_conv2d_im2col(x, w, scale_v, shift_v, act, stride, dilation, padding)
    # depthwise (groups == Cin == Cout)
    return pl_depthwise_fused(x, w[:, 0], scale_v, shift_v, act, stride, dilation, padding)


def bn_scale_shift(bn, eps=1e-5):
    sc = bn["gamma"] / jnp.sqrt(bn["var"] + eps)
    sh = bn["beta"] - bn["mean"] * sc
    return sc, sh


# ----------------------------------------------------------------------------
# Interpolation helpers (gather glue in XLA, matches torch semantics)
# ----------------------------------------------------------------------------
def interp_nearest(x, oh, ow):
    n, h, w, c = x.shape
    ys = (jnp.arange(oh) * h) // oh
    xs = (jnp.arange(ow) * w) // ow
    return x[:, ys][:, :, xs]


def interp_bilinear(x, oh, ow, align_corners):
    # TODO(synk): gather-based resize kept in JAX glue (data-dependent indexing).
    n, h, w, c = x.shape
    if (oh, ow) == (h, w):
        return x

    def coords(osz, isz):
        if align_corners:
            if osz == 1:
                return jnp.zeros((1,), jnp.float32)
            return jnp.arange(osz, dtype=jnp.float32) * (isz - 1) / (osz - 1)
        cc = (jnp.arange(osz, dtype=jnp.float32) + 0.5) * (isz / osz) - 0.5
        return jnp.clip(cc, 0.0, isz - 1)

    ys, xs = coords(oh, h), coords(ow, w)
    y0 = jnp.floor(ys).astype(jnp.int32); y1 = jnp.minimum(y0 + 1, h - 1)
    x0 = jnp.floor(xs).astype(jnp.int32); x1 = jnp.minimum(x0 + 1, w - 1)
    wy = (ys - y0.astype(jnp.float32))[None, :, None, None]
    wx = (xs - x0.astype(jnp.float32))[None, None, :, None]
    r0, r1 = x[:, y0], x[:, y1]                         # gather rows in bf16
    g00 = r0[:, :, x0].astype(jnp.float32); g01 = r0[:, :, x1].astype(jnp.float32)
    g10 = r1[:, :, x0].astype(jnp.float32); g11 = r1[:, :, x1].astype(jnp.float32)
    top = g00 * (1 - wx) + g01 * wx
    bot = g10 * (1 - wx) + g11 * wx
    return (top * (1 - wy) + bot * wy).astype(ACT_DTYPE)


# ----------------------------------------------------------------------------
# Parameter init (deterministic, trunc_normal std=0.02 like _init_weights)
# ----------------------------------------------------------------------------
class KeyGen:
    def __init__(self, seed=0):
        self.key = jax.random.PRNGKey(seed)

    def __call__(self):
        self.key, k = jax.random.split(self.key)
        return k


def _tn(kg, shape, std=0.02):
    return std * jax.random.truncated_normal(kg(), -2.0, 2.0, shape, jnp.float32)


def init_conv2d(kg, cin, cout, k, groups=1, bias=False):
    p = {"w": _tn(kg, (cout, cin // groups, k, k)), "groups": groups, "b": None}
    if bias:
        p["b"] = _tn(kg, (cout,))
    return p


def init_bn(c):
    return {"gamma": jnp.ones((c,), jnp.float32), "beta": jnp.zeros((c,), jnp.float32),
            "mean": jnp.zeros((c,), jnp.float32), "var": jnp.ones((c,), jnp.float32)}


def init_linear(kg, cin, cout):
    return {"w": _tn(kg, (cout, cin))}      # SE Linear layers use bias=False


# --- module builders --------------------------------------------------------
def init_sepconv(kg, cin, cout, k=3, stride=1, dilation=1):
    return {"dw": init_conv2d(kg, cin, cin, k, groups=cin),
            "pw": init_conv2d(kg, cin, cout, 1),
            "bn": init_bn(cout), "stride": stride, "dilation": dilation}


def sepconv(p, x):
    x = conv_apply(p["dw"], x, stride=p["stride"], dilation=p["dilation"])
    sc, sh = bn_scale_shift(p["bn"])
    return conv_apply(p["pw"], x, scale=sc, shift=sh)      # BN fused into 1x1 conv


def init_plain_conv(kg, cin, cout, k=3, dilation=1, stride=1, bias=False):
    return {"conv": init_conv2d(kg, cin, cout, k, bias=bias),
            "stride": stride, "dilation": dilation}


def plain_conv(p, x, act=None):
    return conv_apply(p["conv"], x, stride=p["stride"], dilation=p["dilation"], act=act)


def init_convbn(kg, cin, cout, k=3, dilation=1, stride=1):
    return {"conv": init_conv2d(kg, cin, cout, k), "bn": init_bn(cout),
            "stride": stride, "dilation": dilation}


def convbn(p, x, act=None):
    sc, sh = bn_scale_shift(p["bn"])
    return conv_apply(p["conv"], x, stride=p["stride"], dilation=p["dilation"],
                      scale=sc, shift=sh, act=act)


def init_dwconv_mod(kg, cin, cout):  # DEPTHWISECONV
    return {"d": init_conv2d(kg, cin, cin, 3, groups=cin, bias=True),
            "p": init_conv2d(kg, cin, cout, 1, bias=True)}


def dwconv_mod(p, x):
    return conv_apply(p["p"], conv_apply(p["d"], x))


def init_se(kg, c, r=16):
    return {"fc1": init_linear(kg, c, c // r), "fc2": init_linear(kg, c // r, c)}


def se_scale(p, x):
    # TODO(synk): SE global pool + tiny FC layers are computed in plain JAX
    # (a pallas_call launch would cost more than the compute).
    y = jnp.mean(x.astype(jnp.float32), axis=(1, 2))                  # (N, C)
    y = jnp.maximum(y @ p["fc1"]["w"].T, 0.0)
    y = jax.nn.sigmoid(y @ p["fc2"]["w"].T)
    return y                                                          # (N, C)


def init_mcks(kg, cin, cout):  # multi_convolution_kernel_size
    return {"c3": init_convbn(kg, cin, cout // 2, 3), "c5": init_convbn(kg, cin, cout // 2, 5),
            "c7": init_convbn(kg, cin, cout // 2, 7), "skip": init_convbn(kg, cin, cout // 2, 1),
            "fin": init_dwconv_mod(kg, cout * 2, cout), "se": init_se(kg, cout)}


def mcks(p, x):
    # TODO(synk): the four branch outputs are still concatenated in XLA; writing
    # them into a shared buffer via offset output BlockSpecs would save one copy.
    xcat = jnp.concatenate([convbn(p["c3"], x), convbn(p["c5"], x),
                            convbn(p["c7"], x), convbn(p["skip"], x)], axis=-1)
    y = dwconv_mod(p["fin"], xcat)
    s = se_scale(p["se"], y)
    return pl_fuse(lambda v, se: _apply_act(v * se, "leaky"), y, s)   # SE-mul + leaky fused


def init_rpe(kg, dim):
    return {"conv": init_conv2d(kg, dim, dim, 3, groups=dim, bias=True), "bn": init_bn(dim)}


def rpe_apply(p, x):
    sc, sh = bn_scale_shift(p["bn"])
    y = conv_apply(p["conv"], x, scale=sc, shift=sh)    # bias + BN fused into depthwise
    return pl_fuse(lambda a, b: a + b, x, y, compute_dtype=ACT_DTYPE)


def init_fm(kg, cin, ch):
    return {"alpha": jnp.ones((1,), jnp.float32), "beta": jnp.ones((1,), jnp.float32),
            "ce_a": init_se(kg, ch), "ce_ba": init_se(kg, ch),
            "conv": init_sepconv(kg, cin, ch, 3),
            "conv1": init_sepconv(kg, ch * 2, ch, 1),
            "spa1": init_plain_conv(kg, ch, 1, 3), "spa2": init_plain_conv(kg, ch, 1, 3),
            "br": init_bn(ch), "br1": init_bn(ch),
            "fconv_sep": init_sepconv(kg, ch * 2, ch, 3),
            "fconv_pw": init_conv2d(kg, ch, 1, 1, bias=True)}


def fm_apply(p, x, z):
    f_up = sepconv(p["conv"], z)
    f_up = interp_bilinear(f_up, x.shape[1], x.shape[2], align_corners=False)
    xc = jnp.concatenate([jnp.asarray(x, ACT_DTYPE), f_up], axis=-1)

    y = sepconv(p["fconv_sep"], xc)
    y = conv_apply(p["fconv_pw"], y, act="sigmoid")                  # (N,h,w,1), sigmoid fused

    xc2 = sepconv(p["conv1"], xc)
    f_a = pl_fuse(lambda a, m: a * m, xc2, y, compute_dtype=ACT_DTYPE)
    f_ba = pl_fuse(lambda a, m: a * (1.0 - m), xc2, y, compute_dtype=ACT_DTYPE)

    se_a = se_scale(p["ce_a"], f_a)
    se_ba = se_scale(p["ce_ba"], f_ba)
    sc_a, sh_a = bn_scale_shift(p["br"])
    sc_b, sh_b = bn_scale_shift(p["br1"])
    # SE-mul * alpha, BatchNorm and LeakyReLU fused into one f32 pass each:
    f_a = pl_fuse(lambda v, se, al, s, t: _apply_act((v * se * al) * s + t, "leaky"),
                  f_a, se_a, p["alpha"], sc_a, sh_a)
    f_ba = pl_fuse(lambda v, se, al, s, t: _apply_act((v * se * al) * s + t, "leaky"),
                   f_ba, se_ba, p["beta"], sc_b, sh_b)

    s1 = plain_conv(p["spa1"], f_a, act="sigmoid")                    # (N,h,w,1)
    s2 = plain_conv(p["spa2"], f_ba, act="sigmoid")
    # out = f_up - s1*f_up + s2*f_up, fused
    return pl_fuse(lambda fu, a1, a2: fu * (1.0 - a1 + a2), f_up, s1, s2,
                   compute_dtype=ACT_DTYPE)


def init_dp(kg, embed_dim):  # DetailPath
    d1, d2 = embed_dim // 4, embed_dim // 2
    return {"s": [init_sepconv(kg, 3, d1, stride=2), init_sepconv(kg, d1, d1),
                  init_sepconv(kg, d1, d2, stride=2), init_sepconv(kg, d2, d2),
                  init_sepconv(kg, d2, embed_dim), init_sepconv(kg, embed_dim, embed_dim)]}


def dp_apply(p, x):
    for s in p["s"]:
        x = sepconv(s, x)
    return x


def init_fpn(kg, enc, dec):
    return {"pre": [init_mcks(kg, enc[i], dec) for i in range(4)],
            "post3_cba": init_convbn(kg, dec, dec, 3), "post3_rpe": init_rpe(kg, dec),
            "fm2": init_fm(kg, dec, dec), "fm1": init_fm(kg, dec, dec), "fm0": init_fm(kg, dec, dec)}


def fpn_apply(p, x0, x1, x2, x3):
    x3 = mcks(p["pre"][3], x3)
    x2 = mcks(p["pre"][2], x2)
    x1 = mcks(p["pre"][1], x1)
    x0 = mcks(p["pre"][0], x0)

    def up_add(up, x):
        up = interp_nearest(up, x.shape[1], x.shape[2])
        return pl_fuse(lambda a, b: a + b, up, x, compute_dtype=ACT_DTYPE)

    x2 = up_add(x3, x2)
    x1 = up_add(x2, x1)
    x0 = up_add(x1, x0)
    x3 = convbn(p["post3_cba"], x3, act="relu6")
    x3 = rpe_apply(p["post3_rpe"], x3)
    x3 = interp_bilinear(x3, x2.shape[1], x2.shape[2], align_corners=False)
    x2 = fm_apply(p["fm2"], x3, x2)
    x2 = interp_bilinear(x2, x1.shape[1], x1.shape[2], align_corners=False)
    x1 = fm_apply(p["fm1"], x2, x1)
    x1 = interp_bilinear(x1, x0.shape[1], x0.shape[2], align_corners=False)
    x0 = fm_apply(p["fm0"], x1, x0)
    return x0


def init_backbone(kg, dims):
    # TODO(synk): SwinTransformer definition not provided; conv stand-in with same
    # output strides/channels (4x patch embed + 3 stride-2 ConvBN stages).
    return {"patch_w": _tn(kg, (3 * 4 * 4, dims[0])), "patch_bn": init_bn(dims[0]),
            "stages": [init_convbn(kg, dims[i], dims[i + 1], 3, stride=2) for i in range(3)]}


def backbone_apply(p, x):
    N, H, W, C = x.shape
    x = x.reshape(N, H // 4, 4, W // 4, 4, C).transpose(0, 1, 3, 2, 4, 5)
    x = x.reshape(N * (H // 4) * (W // 4), 4 * 4 * C)
    sc, sh = bn_scale_shift(p["patch_bn"])
    x = pl_matmul_fused(x, p["patch_w"], sc, sh, None).reshape(N, H // 4, W // 4, -1)
    feats = [x]
    for s in p["stages"]:
        x = convbn(s, x, act="relu6")
        feats.append(x)
    return feats


def init_head(kg, dec, c0, num_classes):
    return {"sep": init_sepconv(kg, dec, c0),
            "conv": init_plain_conv(kg, c0, num_classes, 1)}


def head_apply(p, x):
    x = sepconv(p["sep"], x)
    # Dropout(0.1): identity in eval mode.
    x = interp_bilinear(x, x.shape[1] * 2, x.shape[2] * 2, align_corners=True)  # UpsamplingBilinear2d
    return plain_conv(p["conv"], x)


def init_build(kg, decoder_channels, dims, num_classes):
    return {"dp": init_dp(kg, decoder_channels),
            "backbone": init_backbone(kg, dims),
            "fpn": init_fpn(kg, dims, decoder_channels),
            "head": init_head(kg, decoder_channels, dims[0], num_classes)}


def build_forward(params, x_nchw):
    # layout: NCHW in/out at the boundary, NHWC internally (channels -> lanes).
    sz = x_nchw.shape[-2:]
    x = jnp.transpose(x_nchw, (0, 2, 3, 1)).astype(ACT_DTYPE)
    dp = dp_apply(params["dp"], x)
    f0, f1, f2, f3 = backbone_apply(params["backbone"], x)
    y = fpn_apply(params["fpn"], f0, f1, f2, f3)
    y = pl_fuse(lambda a, b: a + b, y, dp, compute_dtype=ACT_DTYPE)
    y = head_apply(params["head"], y)
    y = interp_bilinear(y, sz[0], sz[1], align_corners=False)
    return jnp.transpose(y, (0, 3, 1, 2)).astype(jnp.float32)


if __name__ == "__main__":
    kg = KeyGen(0)
    decoder_channels = 32            # scaled-down analogue of 384
    dims = (16, 32, 64, 128)         # scaled-down analogue of (96, 192, 384, 768)
    num_classes = 5
    params = init_build(kg, decoder_channels, dims, num_classes)

    x = jax.random.normal(jax.random.PRNGKey(0), (2, 3, 64, 64), jnp.float32)
    out = build_forward(params, x)
    out = jax.block_until_ready(out)
    assert out.shape == (2, num_classes, 64, 64), out.shape
    assert bool(jnp.all(jnp.isfinite(out)))
    print("KERNEL_OK")
</pallas_src>

<mosaic_0001>
module attributes {stable_mosaic.version = 11 : i64} {
  func.func @_dw_kernel(%arg0: i32, %arg1: i32, %arg2: i32, %arg3: memref<4x33x33x3xbf16, #tpu.memory_space<vmem>>, %arg4: memref<9x1x1x3xf32, #tpu.memory_space<vmem>>, %arg5: memref<2x1x1x3xf32, #tpu.memory_space<vmem>>, %arg6: memref<1x8x32x3xbf16, #tpu.memory_space<vmem>>) attributes {dimension_semantics = [#tpu.dimension_semantics<parallel>, #tpu.dimension_semantics<parallel>, #tpu.dimension_semantics<parallel>], iteration_bounds = array<i64: 2, 1, 4>, scalar_prefetch = 0 : i64, scratch_operands = 0 : i64, tpu.core_type = #tpu.core_type<tc>, window_params = [{transform_indices = @transform_0, window_bounds = array<i64: 4, 33, 33, 3>}, {transform_indices = @transform_1, window_bounds = array<i64: 9, 1, 1, 3>}, {transform_indices = @transform_2, window_bounds = array<i64: 2, 1, 1, 3>}, {transform_indices = @transform_3, window_bounds = array<i64: 1, 8, 32, 3>}]} {
    %cst = arith.constant 0.000000e+00 : f32
    %0 = vector.broadcast %cst : f32 to vector<8x16x3xf32>
    %c8_i32 = arith.constant 8 : i32
    %1 = arith.muli %arg2, %c8_i32 : i32
    %c0_i32 = arith.constant 0 : i32
    %2 = arith.addi %c0_i32, %1 : i32
    %c0 = arith.constant 0 : index
    %3 = arith.index_cast %2 : i32 to index
    %c0_0 = arith.constant 0 : index
    %c0_1 = arith.constant 0 : index
    %4 = vector.load %arg3[%c0, %3, %c0_0, %c0_1] : memref<4x33x33x3xbf16, #tpu.memory_space<vmem>>, vector<1x8x16x3xbf16>
    %5 = vector.shape_cast %4 : vector<1x8x16x3xbf16> to vector<8x16x3xbf16>
    %6 = arith.extf %5 : vector<8x16x3xbf16> to vector<8x16x3xf32>
    %c0_2 = arith.constant 0 : index
    %c0_3 = arith.constant 0 : index
    %c0_4 = arith.constant 0 : index
    %c0_5 = arith.constant 0 : index
    %7 = vector.load %arg4[%c0_2, %c0_3, %c0_4, %c0_5] : memref<9x1x1x3xf32, #tpu.memory_space<vmem>>, vector<1x1x1x3xf32>
    %8 = vector.shape_cast %7 : vector<1x1x1x3xf32> to vector<1x1x3xf32>
    %9 = vector.broadcast %8 : vector<1x1x3xf32> to vector<8x16x3xf32>
    %10 = arith.mulf %6, %9 : vector<8x16x3xf32>
    %11 = arith.addf %0, %10 : vector<8x16x3xf32>
    %c8_i32_6 = arith.constant 8 : i32
    %12 = arith.muli %arg2, %c8_i32_6 : i32
    %c0_i32_7 = arith.constant 0 : i32
    %13 = arith.addi %c0_i32_7, %12 : i32
    %c1 = arith.constant 1 : index
    %14 = arith.index_cast %13 : i32 to index
    %c0_8 = arith.constant 0 : index
    %c0_9 = arith.constant 0 : index
    %15 = vector.load %arg3[%c1, %14, %c0_8, %c0_9] : memref<4x33x33x3xbf16, #tpu.memory_space<vmem>>, vector<1x8x16x3xbf16>
    %16 = vector.shape_cast %15 : vector<1x8x16x3xbf16> to vector<8x16x3xbf16>
    %17 = arith.extf %16 : vector<8x16x3xbf16> to vector<8x16x3xf32>
    %c1_10 = arith.constant 1 : index
    %c0_11 = arith.constant 0 : index
    %c0_12 = arith.constant 0 : index
    %c0_13 = arith.constant 0 : index
    %18 = vector.load %arg4[%c1_10, %c0_11, %c0_12, %c0_13] : memref<9x1x1x3xf32, #tpu.memory_space<vmem>>, vector<1x1x1x3xf32>
    %19 = vector.shape_cast %18 : vector<1x1x1x3xf32> to vector<1x1x3xf32>
    %20 = vector.broadcast %19 : vector<1x1x3xf32> to vector<8x16x3xf32>
    %21 = arith.mulf %17, %20 : vector<8x16x3xf32>
    %22 = arith.addf %11, %21 : vector<8x16x3xf32>
    %c8_i32_14 = arith.constant 8 : i32
    %23 = arith.muli %arg2, %c8_i32_14 : i32
    %c0_i32_15 = arith.constant 0 : i32
    %24 = arith.addi %c0_i32_15, %23 : i32
    %c0_16 = arith.constant 0 : index
    %25 = arith.index_cast %24 : i32 to index
    %c1_17 = arith.constant 1 : index
    %c0_18 = arith.constant 0 : index
    %26 = vector.load %arg3[%c0_16, %25, %c1_17, %c0_18] : memref<4x33x33x3xbf16, #tpu.memory_space<vmem>>, vector<1x8x16x3xbf16>
    %27 = vector.shape_cast %26 : vector<1x8x16x3xbf16> to vector<8x16x3xbf16>
    %28 = arith.extf %27 : vector<8x16x3xbf16> to vector<8x16x3xf32>
    %c2 = arith.constant 2 : index
    %c0_19 = arith.constant 0 : index
    %c0_20 = arith.constant 0 : index
    %c0_21 = arith.constant 0 : index
    %29 = vector.load %arg4[%c2, %c0_19, %c0_20, %c0_21] : memref<9x1x1x3xf32, #tpu.memory_space<vmem>>, vector<1x1x1x3xf32>
    %30 = vector.shape_cast %29 : vector<1x1x1x3xf32> to vector<1x1x3xf32>
    %31 = vector.broadcast %30 : vector<1x1x3xf32> to vector<8x16x3xf32>
    %32 = arith.mulf %28, %31 : vector<8x16x3xf32>
    %33 = arith.addf %22, %32 : vector<8x16x3xf32>
    %c8_i32_22 = arith.constant 8 : i32
    %34 = arith.muli %arg2, %c8_i32_22 : i32
    %c0_i32_23 = arith.constant 0 : i32
    %35 = arith.addi %c0_i32_23, %34 : i32
    %c2_24 = arith.constant 2 : index
    %36 = arith.index_cast %35 : i32 to index
    %c0_25 = arith.constant 0 : index
    %c0_26 = arith.constant 0 : index
    %37 = vector.load %arg3[%c2_24, %36, %c0_25, %c0_26] : memref<4x33x33x3xbf16, #tpu.memory_space<vmem>>, vector<1x8x16x3xbf16>
    %38 = vector.shape_cast %37 : vector<1x8x16x3xbf16> to vector<8x16x3xbf16>
    %39 = arith.extf %38 : vector<8x16x3xbf16> to vector<8x16x3xf32>
    %c3 = arith.constant 3 : index
    %c0_27 = arith.constant 0 : index
    %c0_28 = arith.constant 0 : index
    %c0_29 = arith.constant 0 : index
    %40 = vector.load %arg4[%c3, %c0_27, %c0_28, %c0_29] : memref<9x1x1x3xf32, #tpu.memory_space<vmem>>, vector<1x1x1x3xf32>
    %41 = vector.shape_cast %40 : vector<1x1x1x3xf32> to vector<1x1x3xf32>
    %42 = vector.broadcast %41 : vector<1x1x3xf32> to vector<8x16x3xf32>
    %43 = arith.mulf %39, %42 : vector<8x16x3xf32>
    %44 = arith.addf %33, %43 : vector<8x16x3xf32>
    %c8_i32_30 = arith.constant 8 : i32
    %45 = arith.muli %arg2, %c8_i32_30 : i32
    %c0_i32_31 = arith.constant 0 : i32
    %46 = arith.addi %c0_i32_31, %45 : i32
    %c3_32 = arith.constant 3 : index
    %47 = arith.index_cast %46 : i32 to index
    %c0_33 = arith.constant 0 : index
    %c0_34 = arith.constant 0 : index
    %48 = vector.load %arg3[%c3_32, %47, %c0_33, %c0_34] : memref<4x33x33x3xbf16, #tpu.memory_space<vmem>>, vector<1x8x16x3xbf16>
    %49 = vector.shape_cast %48 : vector<1x8x16x3xbf16> to vector<8x16x3xbf16>
    %50 = arith.extf %49 : vector<8x16x3xbf16> to vector<8x16x3xf32>
    %c4 = arith.constant 4 : index
    %c0_35 = arith.constant 0 : index
    %c0_36 = arith.constant 0 : index
    %c0_37 = arith.constant 0 : index
    %51 = vector.load %arg4[%c4, %c0_35, %c0_36, %c0_37] : memref<9x1x1x3xf32, #tpu.memory_space<vmem>>, vector<1x1x1x3xf32>
    %52 = vector.shape_cast %51 : vector<1x1x1x3xf32> to vector<1x1x3xf32>
    %53 = vector.broadcast %52 : vector<1x1x3xf32> to vector<8x16x3xf32>
    %54 = arith.mulf %50, %53 : vector<8x16x3xf32>
    %55 = arith.addf %44, %54 : vector<8x16x3xf32>
    %c8_i32_38 = arith.constant 8 : i32
    %56 = arith.muli %arg2, %c8_i32_38 : i32
    %c0_i32_39 = arith.constant 0 : i32
    %57 = arith.addi %c0_i32_39, %56 : i32
    %c2_40 = arith.constant 2 : index
    %58 = arith.index_cast %57 : i32 to index
    %c1_41 = arith.constant 1 : index
    %c0_42 = arith.constant 0 : index
    %59 = vector.load %arg3[%c2_40, %58, %c1_41, %c0_42] : memref<4x33x33x3xbf16, #tpu.memory_space<vmem>>, vector<1x8x16x3xbf16>
    %60 = vector.shape_cast %59 : vector<1x8x16x3xbf16> to vector<8x16x3xbf16>
    %61 = arith.extf %60 : vector<8x16x3xbf16> to vector<8x16x3xf32>
    %c5 = arith.constant 5 : index
    %c0_43 = arith.constant 0 : index
    %c0_44 = arith.constant 0 : index
    %c0_45 = arith.constant 0 : index
    %62 = vector.load %arg4[%c5, %c0_43, %c0_44, %c0_45] : memref<9x1x1x3xf32, #tpu.memory_space<vmem>>, vector<1x1x1x3xf32>
    %63 = vector.shape_cast %62 : vector<1x1x1x3xf32> to vector<1x1x3xf32>
    %64 = vector.broadcast %63 : vector<1x1x3xf32> to vector<8x16x3xf32>
    %65 = arith.mulf %61, %64 : vector<8x16x3xf32>
    %66 = arith.addf %55, %65 : vector<8x16x3xf32>
    %c8_i32_46 = arith.constant 8 : i32
    %67 = arith.muli %arg2, %c8_i32_46 : i32
    %c1_i32 = arith.constant 1 : i32
    %68 = arith.addi %c1_i32, %67 : i32
    %c0_47 = arith.constant 0 : index
    %69 = arith.index_cast %68 : i32 to index
    %c0_48 = arith.constant 0 : index
    %c0_49 = arith.constant 0 : index
    %70 = vector.load %arg3[%c0_47, %69, %c0_48, %c0_49] : memref<4x33x33x3xbf16, #tpu.memory_space<vmem>>, vector<1x8x16x3xbf16>
    %71 = vector.shape_cast %70 : vector<1x8x16x3xbf16> to vector<8x16x3xbf16>
    %72 = arith.extf %71 : vector<8x16x3xbf16> to vector<8x16x3xf32>
    %c6 = arith.constant 6 : index
    %c0_50 = arith.constant 0 : index
    %c0_51 = arith.constant 0 : index
    %c0_52 = arith.constant 0 : index
    %73 = vector.load %arg4[%c6, %c0_50, %c0_51, %c0_52] : memref<9x1x1x3xf32, #tpu.memory_space<vmem>>, vector<1x1x1x3xf32>
    %74 = vector.shape_cast %73 : vector<1x1x1x3xf32> to vector<1x1x3xf32>
    %75 = vector.broadcast %74 : vector<1x1x3xf32> to vector<8x16x3xf32>
    %76 = arith.mulf %72, %75 : vector<8x16x3xf32>
    %77 = arith.addf %66, %76 : vector<8x16x3xf32>
    %c8_i32_53 = arith.constant 8 : i32
    %78 = arith.muli %arg2, %c8_i32_53 : i32
    %c1_i32_54 = arith.constant 1 : i32
    %79 = arith.addi %c1_i32_54, %78 : i32
    %c1_55 = arith.constant 1 : index
    %80 = arith.index_cast %79 : i32 to index
    %c0_56 = arith.constant 0 : index
    %c0_57 = arith.constant 0 : index
    %81 = vector.load %arg3[%c1_55, %80, %c0_56, %c0_57] : memref<4x33x33x3xbf16, #tpu.memory_space<vmem>>, vector<1x8x16x3xbf16>
    %82 = vector.shape_cast %81 : vector<1x8x16x3xbf16> to vector<8x16x3xbf16>
    %83 = arith.extf %82 : vector<8x16x3xbf16> to vector<8x16x3xf32>
    %c7 = arith.constant 7 : index
    %c0_58 = arith.constant 0 : index
    %c0_59 = arith.constant 0 : index
    %c0_60 = arith.constant 0 : index
    %84 = vector.load %arg4[%c7, %c0_58, %c0_59, %c0_60] : memref<9x1x1x3xf32, #tpu.memory_space<vmem>>, vector<1x1x1x3xf32>
    %85 = vector.shape_cast %84 : vector<1x1x1x3xf32> to vector<1x1x3xf32>
    %86 = vector.broadcast %85 : vector<1x1x3xf32> to vector<8x16x3xf32>
    %87 = arith.mulf %83, %86 : vector<8x16x3xf32>
    %88 = arith.addf %77, %87 : vector<8x16x3xf32>
    %c8_i32_61 = arith.constant 8 : i32
    %89 = arith.muli %arg2, %c8_i32_61 : i32
    %c1_i32_62 = arith.constant 1 : i32
    %90 = arith.addi %c1_i32_62, %89 : i32
    %c0_63 = arith.constant 0 : index
    %91 = arith.index_cast %90 : i32 to index
    %c1_64 = arith.constant 1 : index
    %c0_65 = arith.constant 0 : index
    %92 = vector.load %arg3[%c0_63, %91, %c1_64, %c0_65] : memref<4x33x33x3xbf16, #tpu.memory_space<vmem>>, vector<1x8x16x3xbf16>
    %93 = vector.shape_cast %92 : vector<1x8x16x3xbf16> to vector<8x16x3xbf16>
    %94 = arith.extf %93 : vector<8x16x3xbf16> to vector<8x16x3xf32>
    %c8 = arith.constant 8 : index
    %c0_66 = arith.constant 0 : index
    %c0_67 = arith.constant 0 : index
    %c0_68 = arith.constant 0 : index
    %95 = vector.load %arg4[%c8, %c0_66, %c0_67, %c0_68] : memref<9x1x1x3xf32, #tpu.memory_space<vmem>>, vector<1x1x1x3xf32>
    %96 = vector.shape_cast %95 : vector<1x1x1x3xf32> to vector<1x1x3xf32>
    %97 = vector.broadcast %96 : vector<1x1x3xf32> to vector<8x16x3xf32>
    %98 = arith.mulf %94, %97 : vector<8x16x3xf32>
    %99 = arith.addf %88, %98 : vector<8x16x3xf32>
    %c0_69 = arith.constant 0 : index
    %c0_70 = arith.constant 0 : index
    %c0_71 = arith.constant 0 : index
    %c0_72 = arith.constant 0 : index
    %100 = vector.load %arg5[%c0_69, %c0_70, %c0_71, %c0_72] : memref<2x1x1x3xf32, #tpu.memory_space<vmem>>, vector<1x1x1x3xf32>
    %101 = vector.shape_cast %100 : vector<1x1x1x3xf32> to vector<1x1x3xf32>
    %102 = vector.broadcast %101 : vector<1x1x3xf32> to vector<8x16x3xf32>
    %103 = arith.mulf %99, %102 : vector<8x16x3xf32>
    %c1_73 = arith.constant 1 : index
    %c0_74 = arith.constant 0 : index
    %c0_75 = arith.constant 0 : index
    %c0_76 = arith.constant 0 : index
    %104 = vector.load %arg5[%c1_73, %c0_74, %c0_75, %c0_76] : memref<2x1x1x3xf32, #tpu.memory_space<vmem>>, vector<1x1x1x3xf32>
    %105 = vector.shape_cast %104 : vector<1x1x1x3xf32> to vector<1x1x3xf32>
    %106 = vector.broadcast %105 : vector<1x1x3xf32> to vector<8x16x3xf32>
    %107 = arith.addf %103, %106 : vector<8x16x3xf32>
    %108 = arith.truncf %107 : vector<8x16x3xf32> to vector<8x16x3xbf16>
    %c0_77 = arith.constant 0 : index
    %c0_78 = arith.constant 0 : index
    %c0_79 = arith.constant 0 : index
    %c0_80 = arith.constant 0 : index
    %109 = vector.load %arg6[%c0_77, %c0_78, %c0_79, %c0_80] : memref<1x8x32x3xbf16, #tpu.memory_space<vmem>>, vector<1x8x16x3xbf16>
    %110 = vector.shape_cast %109 : vector<1x8x16x3xbf16> to vector<8x16x3xbf16>
    %111 = vector.shape_cast %108 : vector<8x16x3xbf16> to vector<1x8x16x3xbf16>
    tpu.vector_store %arg6[%c0_77, %c0_78, %c0_79, %c0_80], %111 {strides = array<i32>} : memref<1x8x32x3xbf16, #tpu.memory_space<vmem>>, vector<1x8x16x3xbf16>,
    %cst_81 = arith.constant 0.000000e+00 : f32
    %112 = vector.broadcast %cst_81 : f32 to vector<8x16x3xf32>
    %c8_i32_82 = arith.constant 8 : i32
    %113 = arith.muli %arg2, %c8_i32_82 : i32
    %c0_i32_83 = arith.constant 0 : i32
    %114 = arith.addi %c0_i32_83, %113 : i32
    %c0_84 = arith.constant 0 : index
    %115 = arith.index_cast %114 : i32 to index
    %c16 = arith.constant 16 : index
    %c0_85 = arith.constant 0 : index
    %116 = vector.load %arg3[%c0_84, %115, %c16, %c0_85] : memref<4x33x33x3xbf16, #tpu.memory_space<vmem>>, vector<1x8x16x3xbf16>
    %117 = vector.shape_cast %116 : vector<1x8x16x3xbf16> to vector<8x16x3xbf16>
    %118 = arith.extf %117 : vector<8x16x3xbf16> to vector<8x16x3xf32>
    %c0_86 = arith.constant 0 : index
    %c0_87 = arith.constant 0 : index
    %c0_88 = arith.constant 0 : index
    %c0_89 = arith.constant 0 : index
    %119 = vector.load %arg4[%c0_86, %c0_87, %c0_88, %c0_89] : memref<9x1x1x3xf32, #tpu.memory_space<vmem>>, vector<1x1x1x3xf32>
    %120 = vector.shape_cast %119 : vector<1x1x1x3xf32> to vector<1x1x3xf32>
    %121 = vector.broadcast %120 : vector<1x1x3xf32> to vector<8x16x3xf32>
    %122 = arith.mulf %118, %121 : vector<8x16x3xf32>
    %123 = arith.addf %112, %122 : vector<8x16x3xf32>
    %c8_i32_90 = arith.constant 8 : i32
    %124 = arith.muli %arg2, %c8_i32_90 : i32
    %c0_i32_91 = arith.constant 0 : i32
    %125 = arith.addi %c0_i32_91, %124 : i32
    %c1_92 = arith.constant 1 : index
    %126 = arith.index_cast %125 : i32 to index
    %c16_93 = arith.constant 16 : index
    %c0_94 = arith.constant 0 : index
    %127 = vector.load %arg3[%c1_92, %126, %c16_93, %c0_94] : memref<4x33x33x3xbf16, #tpu.memory_space<vmem>>, vector<1x8x16x3xbf16>
    %128 = vector.shape_cast %127 : vector<1x8x16x3xbf16> to vector<8x16x3xbf16>
    %129 = arith.extf %128 : vector<8x16x3xbf16> to vector<8x16x3xf32>
    %c1_95 = arith.constant 1 : index
    %c0_96 = arith.constant 0 : index
    %c0_97 = arith.constant 0 : index
    %c0_98 = arith.constant 0 : index
    %130 = vector.load %arg4[%c1_95, %c0_96, %c0_97, %c0_98] : memref<9x1x1x3xf32, #tpu.memory_space<vmem>>, vector<1x1x1x3xf32>
    %131 = vector.shape_cast %130 : vector<1x1x1x3xf32> to vector<1x1x3xf32>
    %132 = vector.broadcast %131 : vector<1x1x3xf32> to vector<8x16x3xf32>
    %133 = arith.mulf %129, %132 : vector<8x16x3xf32>
    %134 = arith.addf %123, %133 : vector<8x16x3xf32>
    %c8_i32_99 = arith.constant 8 : i32
    %135 = arith.muli %arg2, %c8_i32_99 : i32
    %c0_i32_100 = arith.constant 0 : i32
    %136 = arith.addi %c0_i32_100, %135 : i32
    %c0_101 = arith.constant 0 : index
    %137 = arith.index_cast %136 : i32 to index
    %c17 = arith.constant 17 : index
    %c0_102 = arith.constant 0 : index
    %138 = vector.load %arg3[%c0_101, %137, %c17, %c0_102] : memref<4x33x33x3xbf16, #tpu.memory_space<vmem>>, vector<1x8x16x3xbf16>
    %139 = vector.shape_cast %138 : vector<1x8x16x3xbf16> to vector<8x16x3xbf16>
    %140 = arith.extf %139 : vector<8x16x3xbf16> to vector<8x16x3xf32>
    %c2_103 = arith.constant 2 : index
    %c0_104 = arith.constant 0 : index
    %c0_105 = arith.constant 0 : index
    %c0_106 = arith.constant 0 : index
    %141 = vector.load %arg4[%c2_103, %c0_104, %c0_105, %c0_106] : memref<9x1x1x3xf32, #tpu.memory_space<vmem>>, vector<1x1x1x3xf32>
    %142 = vector.shape_cast %141 : vector<1x1x1x3xf32> to vector<1x1x3xf32>
    %143 = vector.broadcast %142 : vector<1x1x3xf32> to vector<8x16x3xf32>
    %144 = arith.mulf %140, %143 : vector<8x16x3xf32>
    %145 = arith.addf %134, %144 : vector<8x16x3xf32>
    %c8_i32_107 = arith.constant 8 : i32
    %146 = arith.muli %arg2, %c8_i32_107 : i32
    %c0_i32_108 = arith.constant 0 : i32
    %147 = arith.addi %c0_i32_108, %146 : i32
    %c2_109 = arith.constant 2 : index
    %148 = arith.index_cast %147 : i32 to index
    %c16_110 = arith.constant 16 : index
    %c0_111 = arith.constant 0 : index
    %149 = vector.load %arg3[%c2_109, %148, %c16_110, %c0_111] : memref<4x33x33x3xbf16, #tpu.memory_space<vmem>>, vector<1x8x16x3xbf16>
    %150 = vector.shape_cast %149 : vector<1x8x16x3xbf16> to vector<8x16x3xbf16>
    %151 = arith.extf %150 : vector<8x16x3xbf16> to vector<8x16x3xf32>
    %c3_112 = arith.constant 3 : index
    %c0_113 = arith.constant 0 : index
    %c0_114 = arith.constant 0 : index
    %c0_115 = arith.constant 0 : index
    %152 = vector.load %arg4[%c3_112, %c0_113, %c0_114, %c0_115] : memref<9x1x1x3xf32, #tpu.memory_space<vmem>>, vector<1x1x1x3xf32>
    %153 = vector.shape_cast %152 : vector<1x1x1x3xf32> to vector<1x1x3xf32>
    %154 = vector.broadcast %153 : vector<1x1x3xf32> to vector<8x16x3xf32>
    %155 = arith.mulf %151, %154 : vector<8x16x3xf32>
    %156 = arith.addf %145, %155 : vector<8x16x3xf32>
    %c8_i32_116 = arith.constant 8 : i32
    %157 = arith.muli %arg2, %c8_i32_116 : i32
    %c0_i32_117 = arith.constant 0 : i32
    %158 = arith.addi %c0_i32_117, %157 : i32
    %c3_118 = arith.constant 3 : index
    %159 = arith.index_cast %158 : i32 to index
    %c16_119 = arith.constant 16 : index
    %c0_120 = arith.constant 0 : index
    %160 = vector.load %arg3[%c3_118, %159, %c16_119, %c0_120] : memref<4x33x33x3xbf16, #tpu.memory_space<vmem>>, vector<1x8x16x3xbf16>
    %161 = vector.shape_cast %160 : vector<1x8x16x3xbf16> to vector<8x16x3xbf16>
    %162 = arith.extf %161 : vector<8x16x3xbf16> to vector<8x16x3xf32>
    %c4_121 = arith.constant 4 : index
    %c0_122 = arith.constant 0 : index
    %c0_123 = arith.constant 0 : index
    %c0_124 = arith.constant 0 : index
    %163 = vector.load %arg4[%c4_121, %c0_122, %c0_123, %c0_124] : memref<9x1x1x3xf32, #tpu.memory_space<vmem>>, vector<1x1x1x3xf32>
    %164 = vector.shape_cast %163 : vector<1x1x1x3xf32> to vector<1x1x3xf32>
    %165 = vector.broadcast %164 : vector<1x1x3xf32> to vector<8x16x3xf32>
    %166 = arith.mulf %162, %165 : vector<8x16x3xf32>
    %167 = arith.addf %156, %166 : vector<8x16x3xf32>
    %c8_i32_125 = arith.constant 8 : i32
    %168 = arith.muli %arg2, %c8_i32_125 : i32
    %c0_i32_126 = arith.constant 0 : i32
    %169 = arith.addi %c0_i32_126, %168 : i32
    %c2_127 = arith.constant 2 : index
    %170 = arith.index_cast %169 : i32 to index
    %c17_128 = arith.constant 17 : index
    %c0_129 = arith.constant 0 : index
    %171 = vector.load %arg3[%c2_127, %170, %c17_128, %c0_129] : memref<4x33x33x3xbf16, #tpu.memory_space<vmem>>, vector<1x8x16x3xbf16>
    %172 = vector.shape_cast %171 : vector<1x8x16x3xbf16> to vector<8x16x3xbf16>
    %173 = arith.extf %172 : vector<8x16x3xbf16> to vector<8x16x3xf32>
    %c5_130 = arith.constant 5 : index
    %c0_131 = arith.constant 0 : index
    %c0_132 = arith.constant 0 : index
    %c0_133 = arith.constant 0 : index
    %174 = vector.load %arg4[%c5_130, %c0_131, %c0_132, %c0_133] : memref<9x1x1x3xf32, #tpu.memory_space<vmem>>, vector<1x1x1x3xf32>
    %175 = vector.shape_cast %174 : vector<1x1x1x3xf32> to vector<1x1x3xf32>
    %176 = vector.broadcast %175 : vector<1x1x3xf32> to vector<8x16x3xf32>
    %177 = arith.mulf %173, %176 : vector<8x16x3xf32>
    %178 = arith.addf %167, %177 : vector<8x16x3xf32>
    %c8_i32_134 = arith.constant 8 : i32
    %179 = arith.muli %arg2, %c8_i32_134 : i32
    %c1_i32_135 = arith.constant 1 : i32
    %180 = arith.addi %c1_i32_135, %179 : i32
    %c0_136 = arith.constant 0 : index
    %181 = arith.index_cast %180 : i32 to index
    %c16_137 = arith.constant 16 : index
    %c0_138 = arith.constant 0 : index
    %182 = vector.load %arg3[%c0_136, %181, %c16_137, %c0_138] : memref<4x33x33x3xbf16, #tpu.memory_space<vmem>>, vector<1x8x16x3xbf16>
    %183 = vector.shape_cast %182 : vector<1x8x16x3xbf16> to vector<8x16x3xbf16>
    %184 = arith.extf %183 : vector<8x16x3xbf16> to vector<8x16x3xf32>
    %c6_139 = arith.constant 6 : index
    %c0_140 = arith.constant 0 : index
    %c0_141 = arith.constant 0 : index
    %c0_142 = arith.constant 0 : index
    %185 = vector.load %arg4[%c6_139, %c0_140, %c0_141, %c0_142] : memref<9x1x1x3xf32, #tpu.memory_space<vmem>>, vector<1x1x1x3xf32>
    %186 = vector.shape_cast %185 : vector<1x1x1x3xf32> to vector<1x1x3xf32>
    %187 = vector.broadcast %186 : vector<1x1x3xf32> to vector<8x16x3xf32>
    %188 = arith.mulf %184, %187 : vector<8x16x3xf32>
    %189 = arith.addf %178, %188 : vector<8x16x3xf32>
    %c8_i32_143 = arith.constant 8 : i32
    %190 = arith.muli %arg2, %c8_i32_143 : i32
    %c1_i32_144 = arith.constant 1 : i32
    %191 = arith.addi %c1_i32_144, %190 : i32
    %c1_145 = arith.constant 1 : index
    %192 = arith.index_cast %191 : i32 to index
    %c16_146 = arith.constant 16 : index
    %c0_147 = arith.constant 0 : index
    %193 = vector.load %arg3[%c1_145, %192, %c16_146, %c0_147] : memref<4x33x33x3xbf16, #tpu.memory_space<vmem>>, vector<1x8x16x3xbf16>
    %194 = vector.shape_cast %193 : vector<1x8x16x3xbf16> to vector<8x16x3xbf16>
    %195 = arith.extf %194 : vector<8x16x3xbf16> to vector<8x16x3xf32>
    %c7_148 = arith.constant 7 : index
    %c0_149 = arith.constant 0 : index
    %c0_150 = arith.constant 0 : index
    %c0_151 = arith.constant 0 : index
    %196 = vector.load %arg4[%c7_148, %c0_149, %c0_150, %c0_151] : memref<9x1x1x3xf32, #tpu.memory_space<vmem>>, vector<1x1x1x3xf32>
    %197 = vector.shape_cast %196 : vector<1x1x1x3xf32> to vector<1x1x3xf32>
    %198 = vector.broadcast %197 : vector<1x1x3xf32> to vector<8x16x3xf32>
    %199 = arith.mulf %195, %198 : vector<8x16x3xf32>
    %200 = arith.addf %189, %199 : vector<8x16x3xf32>
    %c8_i32_152 = arith.constant 8 : i32
    %201 = arith.muli %arg2, %c8_i32_152 : i32
    %c1_i32_153 = arith.constant 1 : i32
    %202 = arith.addi %c1_i32_153, %201 : i32
    %c0_154 = arith.constant 0 : index
    %203 = arith.index_cast %202 : i32 to index
    %c17_155 = arith.constant 17 : index
    %c0_156 = arith.constant 0 : index
    %204 = vector.load %arg3[%c0_154, %203, %c17_155, %c0_156] : memref<4x33x33x3xbf16, #tpu.memory_space<vmem>>, vector<1x8x16x3xbf16>
    %205 = vector.shape_cast %204 : vector<1x8x16x3xbf16> to vector<8x16x3xbf16>
    %206 = arith.extf %205 : vector<8x16x3xbf16> to vector<8x16x3xf32>
    %c8_157 = arith.constant 8 : index
    %c0_158 = arith.constant 0 : index
    %c0_159 = arith.constant 0 : index
    %c0_160 = arith.constant 0 : index
    %207 = vector.load %arg4[%c8_157, %c0_158, %c0_159, %c0_160] : memref<9x1x1x3xf32, #tpu.memory_space<vmem>>, vector<1x1x1x3xf32>
    %208 = vector.shape_cast %207 : vector<1x1x1x3xf32> to vector<1x1x3xf32>
    %209 = vector.broadcast %208 : vector<1x1x3xf32> to vector<8x16x3xf32>
    %210 = arith.mulf %206, %209 : vector<8x16x3xf32>
    %211 = arith.addf %200, %210 : vector<8x16x3xf32>
    %c0_161 = arith.constant 0 : index
    %c0_162 = arith.constant 0 : index
    %c0_163 = arith.constant 0 : index
    %c0_164 = arith.constant 0 : index
    %212 = vector.load %arg5[%c0_161, %c0_162, %c0_163, %c0_164] : memref<2x1x1x3xf32, #tpu.memory_space<vmem>>, vector<1x1x1x3xf32>
    %213 = vector.shape_cast %212 : vector<1x1x1x3xf32> to vector<1x1x3xf32>
    %214 = vector.broadcast %213 : vector<1x1x3xf32> to vector<8x16x3xf32>
    %215 = arith.mulf %211, %214 : vector<8x16x3xf32>
    %c1_165 = arith.constant 1 : index
    %c0_166 = arith.constant 0 : index
    %c0_167 = arith.constant 0 : index
    %c0_168 = arith.constant 0 : index
    %216 = vector.load %arg5[%c1_165, %c0_166, %c0_167, %c0_168] : memref<2x1x1x3xf32, #tpu.memory_space<vmem>>, vector<1x1x1x3xf32>
    %217 = vector.shape_cast %216 : vector<1x1x1x3xf32> to vector<1x1x3xf32>
    %218 = vector.broadcast %217 : vector<1x1x3xf32> to vector<8x16x3xf32>
    %219 = arith.addf %215, %218 : vector<8x16x3xf32>
    %220 = arith.truncf %219 : vector<8x16x3xf32> to vector<8x16x3xbf16>
    %c0_169 = arith.constant 0 : index
    %c0_170 = arith.constant 0 : index
    %c16_171 = arith.constant 16 : index
    %c0_172 = arith.constant 0 : index
    %221 = vector.load %arg6[%c0_169, %c0_170, %c16_171, %c0_172] : memref<1x8x32x3xbf16, #tpu.memory_space<vmem>>, vector<1x8x16x3xbf16>
    %222 = vector.shape_cast %221 : vector<1x8x16x3xbf16> to vector<8x16x3xbf16>
    %223 = vector.shape_cast %220 : vector<8x16x3xbf16> to vector<1x8x16x3xbf16>
    tpu.vector_store %arg6[%c0_169, %c0_170, %c16_171, %c0_172], %223 {strides = array<i32>} : memref<1x8x32x3xbf16, #tpu.memory_space<vmem>>, vector<1x8x16x3xbf16>,
    return
  }
  func.func @transform_0(%arg0: i32, %arg1: i32, %arg2: i32) -> (i32, i32, i32, i32) {
    %c0_i32 = arith.constant 0 : i32
    %c0_i32_0 = arith.constant 0 : i32
    %c0_i32_1 = arith.constant 0 : i32
    return %arg0, %c0_i32, %c0_i32_0, %arg1 : i32, i32, i32, i32
  }
  func.func @transform_1(%arg0: i32, %arg1: i32, %arg2: i32) -> (i32, i32, i32, i32) {
    %c0_i32 = arith.constant 0 : i32
    %c0_i32_0 = arith.constant 0 : i32
    %c0_i32_1 = arith.constant 0 : i32
    %c0_i32_2 = arith.constant 0 : i32
    return %c0_i32, %c0_i32_0, %c0_i32_1, %arg1 : i32, i32, i32, i32
  }
  func.func @transform_2(%arg0: i32, %arg1: i32, %arg2: i32) -> (i32, i32, i32, i32) {
    %c0_i32 = arith.constant 0 : i32
    %c0_i32_0 = arith.constant 0 : i32
    %c0_i32_1 = arith.constant 0 : i32
    %c0_i32_2 = arith.constant 0 : i32
    return %c0_i32, %c0_i32_0, %c0_i32_1, %arg1 : i32, i32, i32, i32
  }
  func.func @transform_3(%arg0: i32, %arg1: i32, %arg2: i32) -> (i32, i32, i32, i32) {
    %c0_i32 = arith.constant 0 : i32
    %c0_i32_0 = arith.constant 0 : i32
    return %arg0, %arg2, %c0_i32, %arg1 : i32, i32, i32, i32
  }
}

</mosaic_0001>

<llo_original>
// kernel: tpu_custom_call.1
$region0: #{tpu_custom_call.1}
  #allocation0 [shape = 'u32[]', space=smem, size = 0x4, offset = 0x4, fixed_abs, tag = 'smem constant byte address 0x4 - core index']
  #allocation1 [shape = 'u32[72,128]{1,0:T(1,128)}', space=vmem, size = 0x9000, scoped, tag = 'internal scratch']
  %s0 = inlined_call_operand.vmem [shape: bf16[8,33,33,3], index: 0, kind: input, shape index: {}]
  %s1 = inlined_call_operand.vmem [shape: f32[9,1,1,3], index: 1, kind: input, shape index: {}]
  %s2 = inlined_call_operand.vmem [shape: f32[2,1,1,3], index: 2, kind: input, shape index: {}]
  %s3 = inlined_call_operand.vmem [shape: bf16[2,32,32,3], index: 3, kind: output, shape index: {}]
  %s4 = sld [smem:[#allocation0]]
  $region45: #{tpu_custom_call.1} parent=0
    _
  %s6 = ssub.s32 1, %s4
  %s7 = scalar_select 0, %s6, %s4
  loop: start=0, step=1, limit=10
  $region2: #{tpu_custom_call.1} parent=0 // loop_pre_header
    _
  $region3: #{tpu_custom_call.1} parent=0 // loop_header
    %s9 = sphi 0, %s13
    %p10 = scmp.ge.s32.totalorder %s9, 10
    %s16 = sphi 0, %s35
    %s17 = sphi 0, %s31
    %s18 = sphi 0, %s27
    %s19 = sphi 0, %s16
    %s20 = sphi 0, %s17
    %s21 = sphi 0, %s18
    %s22 = sphi 0, %s19
    %s23 = sphi 0, %s20
    %s24 = sphi 0, %s21
    %s40 = sphi 0, %s42
    %s43 = sphi 0, %s40
    %s44 = sphi 0, %s43
    %s60 = sphi 0, %s44
    %s66 = sphi 0, %s68
    %s69 = sphi 0, %s66
    %s70 = sphi 0, %s69
    %s86 = sphi 0, %s70
    %s92 = sphi 0, %s94
    %s95 = sphi 0, %s92
    %s96 = sphi 0, %s95
    %s112 = sphi 0, %s96
    %s122 = sphi 0, %s124
    %s125 = sphi 0, %s122
    %s126 = sphi 0, %s125
    %s142 = sphi 0, %s126
  $region4: #{tpu_custom_call.1} parent=0 // loop_header_branch
    %12 = sbr.rel (%p10) target = $region8
  $region5: #{tpu_custom_call.1} parent=0 // loop_body
    %s14 = ssub.s32 %s9, 1
    %s15 = ssub.s32 %s9, 2
    %s25 = sadd.s32 1, %s18
    %p26 = scmp.ge.s32.totalorder %s25, 4
    %s27 = scalar_select %p26, 0, %s25
    %s28 = sadd.s32 1, %s17
    %s29 = scalar_select %p26, %s28, %s17
    %p30 = scmp.ge.s32.totalorder %s29, 1
    %s31 = scalar_select %p30, 0, %s29
    %s32 = sadd.s32 1, %s16
    %s33 = scalar_select %p30, %s32, %s16
    %p34 = scmp.ge.s32.totalorder %s33, 2
    %s35 = scalar_select %p34, 0, %s33
    %s36 = ssub.s32 %s16, %s35
    %s37 = ssub.s32 %s17, %s31
    %s38 = sor.u32 %s36, %s37
    %p39 = scmp.eq.s32.totalorder %s38, 0
    %s41 = sadd.s32 %s40, 1
    %s42 = scalar_select %p39, %s40, %s41
    %p45 = pneg %p39
    %p46 = scmp.eq.s32.totalorder %s9, 7
    %p47 = por %p45, %p46
    %p48 = scmp.ne.s32.totalorder %s40, %s43
    %p49 = scmp.eq.s32.totalorder %s9, 0
    %p50 = por %p48, %p49
    %p51 = scmp.ne.s32.totalorder %s40, %s43
    %p52 = scmp.eq.s32.totalorder %s14, 7
    %p53 = por %p51, %p52
    %p54 = scmp.ne.s32.totalorder %s43, %s44
    %p55 = scmp.eq.s32.totalorder %s14, 0
    %p56 = por %p54, %p55
    %p57 = scmp.ne.s32.totalorder %s43, %s44
    %p58 = scmp.eq.s32.totalorder %s15, 7
    %p59 = por %p57, %p58
    %p61 = scmp.ne.s32.totalorder %s44, %s60
    %p62 = scmp.eq.s32.totalorder %s15, 0
    %p63 = por %p61, %p62
    %s64 = ssub.s32 %s17, %s31
    %p65 = scmp.eq.s32.totalorder %s64, 0
    %s67 = sadd.s32 %s66, 1
    %s68 = scalar_select %p65, %s66, %s67
    %p71 = pneg %p65
    %p72 = scmp.eq.s32.totalorder %s9, 7
    %p73 = por %p71, %p72
    %p74 = scmp.ne.s32.totalorder %s66, %s69
    %p75 = scmp.eq.s32.totalorder %s9, 0
    %p76 = por %p74, %p75
    %p77 = scmp.ne.s32.totalorder %s66, %s69
    %p78 = scmp.eq.s32.totalorder %s14, 7
    %p79 = por %p77, %p78
    %p80 = scmp.ne.s32.totalorder %s69, %s70
    %p81 = scmp.eq.s32.totalorder %s14, 0
    %p82 = por %p80, %p81
    %p83 = scmp.ne.s32.totalorder %s69, %s70
    %p84 = scmp.eq.s32.totalorder %s15, 7
    %p85 = por %p83, %p84
    %p87 = scmp.ne.s32.totalorder %s70, %s86
    %p88 = scmp.eq.s32.totalorder %s15, 0
    %p89 = por %p87, %p88
    %s90 = ssub.s32 %s17, %s31
    %p91 = scmp.eq.s32.totalorder %s90, 0
    %s93 = sadd.s32 %s92, 1
    %s94 = scalar_select %p91, %s92, %s93
    %p97 = pneg %p91
    %p98 = scmp.eq.s32.totalorder %s9, 7
    %p99 = por %p97, %p98
    %p100 = scmp.ne.s32.totalorder %s92, %s95
    %p101 = scmp.eq.s32.totalorder %s9, 0
    %p102 = por %p100, %p101
    %p103 = scmp.ne.s32.totalorder %s92, %s95
    %p104 = scmp.eq.s32.totalorder %s14, 7
    %p105 = por %p103, %p104
    %p106 = scmp.ne.s32.totalorder %s95, %s96
    %p107 = scmp.eq.s32.totalorder %s14, 0
    %p108 = por %p106, %p107
    %p109 = scmp.ne.s32.totalorder %s95, %s96
    %p110 = scmp.eq.s32.totalorder %s15, 7
    %p111 = por %p109, %p110
    %p113 = scmp.ne.s32.totalorder %s96, %s112
    %p114 = scmp.eq.s32.totalorder %s15, 0
    %p115 = por %p113, %p114
    %s116 = ssub.s32 %s16, %s35
    %s117 = ssub.s32 %s18, %s27
    %s118 = sor.u32 %s116, %s117
    %s119 = ssub.s32 %s17, %s31
    %s120 = sor.u32 %s118, %s119
    %p121 = scmp.eq.s32.totalorder %s120, 0
    %s123 = sadd.s32 %s122, 1
    %s124 = scalar_select %p121, %s122, %s123
    %p127 = pneg %p121
    %p128 = scmp.eq.s32.totalorder %s9, 7
    %p129 = por %p127, %p128
    %p130 = scmp.ne.s32.totalorder %s122, %s125
    %p131 = scmp.eq.s32.totalorder %s9, 0
    %p132 = por %p130, %p131
    %p133 = scmp.ne.s32.totalorder %s122, %s125
    %p134 = scmp.eq.s32.totalorder %s14, 7
    %p135 = por %p133, %p134
    %p136 = scmp.ne.s32.totalorder %s125, %s126
    %p137 = scmp.eq.s32.totalorder %s14, 0
    %p138 = por %p136, %p137
    %p139 = scmp.ne.s32.totalorder %s125, %s126
    %p140 = scmp.eq.s32.totalorder %s15, 7
    %p141 = por %p139, %p140
    %p143 = scmp.ne.s32.totalorder %s126, %s142
    %p144 = scmp.eq.s32.totalorder %s15, 0
    %p145 = por %p143, %p144
    %p146 = scmp.le.s32.totalorder 1, %s9
    %p147 = scmp.lt.s32.totalorder %s9, 9
    %p148 = pnand %p146, %p147
    %p149 = pneg %p148
    // Predicated region
    $region9: #{tpu_custom_call.1} parent=5 // pred_check
      _
    $region10: #{tpu_custom_call.1} parent=5 // pred_check_branch
      %151 = sbr.rel (%p148) target = $region12
    $region11: #{tpu_custom_call.1} parent=5 // pred_region
      %s152 = ssub.s32 %s9, 1
      // Predicated region
      $region13: #{tpu_custom_call.1} parent=11 // pred_check
        %p153 = pneg %p82
      $region14: #{tpu_custom_call.1} parent=11 // pred_check_branch
        %155 = sbr.rel (%p153) target = $region16
      $region15: #{tpu_custom_call.1} parent=11 // pred_region
        %p156 = scmp.lt.s32.totalorder %s20, 0
        %s157 = scalar_select %p156, %s20, 0
        %s158 = scalar_lea.vmem %s1, %s157
      $region16: #{tpu_custom_call.1} parent=11 // pred_fallthru
        _
      // Predicated region
      $region17: #{tpu_custom_call.1} parent=11 // pred_check
        %p159 = pneg %p108
      $region18: #{tpu_custom_call.1} parent=11 // pred_check_branch
        %161 = sbr.rel (%p159) target = $region20
      $region19: #{tpu_custom_call.1} parent=11 // pred_region
        %p162 = scmp.lt.s32.totalorder %s20, 0
        %s163 = scalar_select %p162, %s20, 0
        %s164 = scalar_lea.vmem %s2, %s163
      $region20: #{tpu_custom_call.1} parent=11 // pred_fallthru
        _
    $region12: #{tpu_custom_call.1} parent=5 // pred_fallthru
      _
    %p165 = scmp.lt.s32.totalorder %s9, 8
    // Predicated region
    $region21: #{tpu_custom_call.1} parent=5 // pred_check
      %p166 = pneg %p165
    $region22: #{tpu_custom_call.1} parent=5 // pred_check_branch
      %168 = sbr.rel (%p166) target = $region24
    $region23: #{tpu_custom_call.1} parent=5 // pred_region
      // Predicated region
      $region25: #{tpu_custom_call.1} parent=23 // pred_check
        %p169 = pneg %p50
      $region26: #{tpu_custom_call.1} parent=23 // pred_check_branch
        %171 = sbr.rel (%p169) target = $region28
      $region27: #{tpu_custom_call.1} parent=23 // pred_region
        %s172 = smul.u32 4, %s16
        %p173 = scmp.lt.s32.totalorder %s172, 7
        %s174 = scalar_select %p173, %s172, 7
        %p175 = scmp.lt.s32.totalorder %s17, 0
        %s176 = scalar_select %p175, %s17, 0
        %s177 = smul.addr %s174, 165
        %s178 = sadd.s32 %s176, %s177
        %s179 = smul.addr %s178, 4
        %s180 = scalar_lea.vmem %s0, %s179
        %s181 = smul.u32 4, %s16
      $region28: #{tpu_custom_call.1} parent=23 // pred_fallthru
        _
    $region24: #{tpu_custom_call.1} parent=5 // pred_fallthru
      _
    %p182 = scmp.le.s32.totalorder 1, %s9
    %p183 = scmp.lt.s32.totalorder %s9, 9
    %p184 = pnand %p182, %p183
    %p185 = pneg %p184
    // Predicated region
    $region29: #{tpu_custom_call.1} parent=5 // pred_check
      _
    $region30: #{tpu_custom_call.1} parent=5 // pred_check_branch
      %187 = sbr.rel (%p184) target = $region32
    $region31: #{tpu_custom_call.1} parent=5 // pred_region
      %s188 = ssub.s32 %s9, 1
      %s189 = smul.u32 4, %s19
      %p190 = scmp.lt.s32.totalorder %s189, 7
      %s191 = scalar_select %p190, %s189, 7
      %p192 = scmp.lt.s32.totalorder %s20, 0
      %s193 = scalar_select %p192, %s20, 0
      %s194 = smul.addr %s191, 165
      %s195 = sadd.s32 %s193, %s194
      %s196 = smul.addr %s195, 4
      %s197 = scalar_lea.vmem %s0, %s196
      %p198 = pneg %p56
      %p199 = pneg %p53
      %p200 = scmp.lt.s32.totalorder %s20, 0
      %s201 = scalar_select %p200, %s20, 0
      %s202 = scalar_lea.vmem %s1, %s201
      %p203 = pneg %p82
      %p204 = pneg %p79
      %p205 = scmp.lt.s32.totalorder %s20, 0
      %s206 = scalar_select %p205, %s20, 0
      %s207 = scalar_lea.vmem %s2, %s206
      %p208 = pneg %p108
      %p209 = pneg %p105
      %p210 = pneg %p138
      %p211 = pneg %p135
      %s212 = smul.u32 8, %s21
      %p213 = scmp.lt.s32.totalorder %s19, 1
      %s214 = scalar_select %p213, %s19, 1
      %p215 = scmp.lt.s32.totalorder %s212, 31
      %s216 = scalar_select %p215, %s212, 31
      %p217 = scmp.lt.s32.totalorder %s20, 0
      %s218 = scalar_select %p217, %s20, 0
      %s219 = smul.addr %s216, 4
      %s220 = sadd.s32 %s218, %s219
      %s221 = smul.addr %s214, 128
      %s222 = sadd.s32 %s220, %s221
      %s223 = smul.addr %s222, 4
      %s224 = scalar_lea.vmem %s3, %s223
      %s225 = smul.u32 4, %s19
      %p226 = scmp.lt.s32.totalorder %s225, 7
      %s227 = scalar_select %p226, %s225, 7
      %p228 = scmp.lt.s32.totalorder %s20, 0
      %s229 = scalar_select %p228, %s20, 0
      %s230 = smul.addr %s227, 165
      %s231 = sadd.s32 %s229, %s230
      %s232 = smul.addr %s231, 4
      %s233 = scalar_lea.vmem %s0, %s232
      %s234 = smul.u32 4, %s19
      %p235 = scmp.lt.s32.totalorder %s20, 0
      %s236 = scalar_select %p235, %s20, 0
      %s237 = scalar_lea.vmem %s1, %s236
      %p238 = scmp.lt.s32.totalorder %s20, 0
      %s239 = scalar_select %p238, %s20, 0
      %s240 = scalar_lea.vmem %s2, %s239
      %s241 = smul.u32 8, %s21
      %p242 = scmp.lt.s32.totalorder %s19, 1
      %s243 = scalar_select %p242, %s19, 1
      %p244 = scmp.lt.s32.totalorder %s241, 31
      %s245 = scalar_select %p244, %s241, 31
      %p246 = scmp.lt.s32.totalorder %s20, 0
      %s247 = scalar_select %p246, %s20, 0
      %s248 = smul.addr %s245, 4
      %s249 = sadd.s32 %s247, %s248
      %s250 = smul.addr %s243, 128
      %s251 = sadd.s32 %s249, %s250
      %s252 = smul.addr %s251, 4
      %s253 = scalar_lea.vmem %s3, %s252
      %s254 = smul.u32 8, %s21
      %s255 = smul.u32 %s21, 8
      %s256 = smul.u32 %s255, 5
      %s257 = smul.addr %s256, 4
      %s258 = scalar_lea.vmem %s233, %s257
      %v259 = vld [vmem:[%s258] sm:$0xf]
      %v260 = vld [vmem:[%s258 + $0x4] sm:$0xf]
      %v261 = vld [vmem:[%s258 + $0x14] sm:$0xf]
      %v262 = vld [vmem:[%s258 + $0x18] sm:$0xf]
      %v263 = vld [vmem:[%s258 + $0x28] sm:$0xf]
      %v264 = vld [vmem:[%s258 + $0x2c] sm:$0xf]
      %v265 = vld [vmem:[%s258 + $0x3c] sm:$0xf]
      %v266 = vld [vmem:[%s258 + $0x40] sm:$0xf]
      %v267 = vld [vmem:[%s258 + $0x50] sm:$0xf]
      %v268 = vld [vmem:[%s258 + $0x54] sm:$0xf]
      %v269 = vld [vmem:[%s258 + $0x64] sm:$0xf]
      %v270 = vld [vmem:[%s258 + $0x68] sm:$0xf]
      %v271 = vld [vmem:[%s258 + $0x78] sm:$0xf]
      %v272 = vld [vmem:[%s258 + $0x7c] sm:$0xf]
      %v273 = vld [vmem:[%s258 + $0x8c] sm:$0xf]
      %v274 = vld [vmem:[%s258 + $0x90] sm:$0xf]
      %v275 = vunpack.c.l.bf16 %v259
      %v276 = vunpack.c.l.bf16 %v260
      %v277 = vunpack.c.l.bf16 %v261
      %v278 = vunpack.c.l.bf16 %v262
      %v279 = vunpack.c.l.bf16 %v263
      %v280 = vunpack.c.l.bf16 %v264
      %v281 = vunpack.c.l.bf16 %v265
      %v282 = vunpack.c.l.bf16 %v266
      %v283 = vunpack.c.l.bf16 %v267
      %v284 = vunpack.c.l.bf16 %v268
      %v285 = vunpack.c.l.bf16 %v269
      %v286 = vunpack.c.l.bf16 %v270
      %v287 = vunpack.c.l.bf16 %v271
      %v288 = vunpack.c.l.bf16 %v272
      %v289 = vunpack.c.l.bf16 %v273
      %v290 = vunpack.c.l.bf16 %v274
      %v291 = vld [vmem:[%s237] sm:$0x1]
      %v293 = vperm.slane %v291, 0
      %v295 = vmul.f32 %v275, %v293
      %v296 = vmul.f32 %v276, %v293
      %v297 = vmul.f32 %v277, %v293
      %v298 = vmul.f32 %v278, %v293
      %v299 = vmul.f32 %v279, %v293
      %v300 = vmul.f32 %v280, %v293
      %v301 = vmul.f32 %v281, %v293
      %v302 = vmul.f32 %v282, %v293
      %v303 = vmul.f32 %v283, %v293
      %v304 = vmul.f32 %v284, %v293
      %v305 = vmul.f32 %v285, %v293
      %v306 = vmul.f32 %v286, %v293
      %v307 = vmul.f32 %v287, %v293
      %v308 = vmul.f32 %v288, %v293
      %v309 = vmul.f32 %v289, %v293
      %v310 = vmul.f32 %v290, %v293
      %v311 = vadd.f32 %v295, 0.0
      %v312 = vadd.f32 %v296, 0.0
      %v313 = vadd.f32 %v297, 0.0
      %v314 = vadd.f32 %v298, 0.0
      %v315 = vadd.f32 %v299, 0.0
      %v316 = vadd.f32 %v300, 0.0
      %v317 = vadd.f32 %v301, 0.0
      %v318 = vadd.f32 %v302, 0.0
      %v319 = vadd.f32 %v303, 0.0
      %v320 = vadd.f32 %v304, 0.0
      %v321 = vadd.f32 %v305, 0.0
      %v322 = vadd.f32 %v306, 0.0
      %v323 = vadd.f32 %v307, 0.0
      %v324 = vadd.f32 %v308, 0.0
      %v325 = vadd.f32 %v309, 0.0
      %v326 = vadd.f32 %v310, 0.0
      %s327 = sadd.s32 %s256, 165
      %s328 = smul.addr %s327, 4
      %s329 = scalar_lea.vmem %s233, %s328
      %v330 = vld [vmem:[%s329] sm:$0xf]
      %v331 = vld [vmem:[%s329 + $0x4] sm:$0xf]
      %v332 = vld [vmem:[%s329 + $0x14] sm:$0xf]
      %v333 = vld [vmem:[%s329 + $0x18] sm:$0xf]
      %v334 = vld [vmem:[%s329 + $0x28] sm:$0xf]
      %v335 = vld [vmem:[%s329 + $0x2c] sm:$0xf]
      %v336 = vld [vmem:[%s329 + $0x3c] sm:$0xf]
      %v337 = vld [vmem:[%s329 + $0x40] sm:$0xf]
      %v338 = vld [vmem:[%s329 + $0x50] sm:$0xf]
      %v339 = vld [vmem:[%s329 + $0x54] sm:$0xf]
      %v340 = vld [vmem:[%s329 + $0x64] sm:$0xf]
      %v341 = vld [vmem:[%s329 + $0x68] sm:$0xf]
      %v342 = vld [vmem:[%s329 + $0x78] sm:$0xf]
      %v343 = vld [vmem:[%s329 + $0x7c] sm:$0xf]
      %v344 = vld [vmem:[%s329 + $0x8c] sm:$0xf]
      %v345 = vld [vmem:[%s329 + $0x90] sm:$0xf]
      %v346 = vunpack.c.l.bf16 %v330
      %v347 = vunpack.c.l.bf16 %v331
      %v348 = vunpack.c.l.bf16 %v332
      %v349 = vunpack.c.l.bf16 %v333
      %v350 = vunpack.c.l.bf16 %v334
      %v351 = vunpack.c.l.bf16 %v335
      %v352 = vunpack.c.l.bf16 %v336
      %v353 = vunpack.c.l.bf16 %v337
      %v354 = vunpack.c.l.bf16 %v338
      %v355 = vunpack.c.l.bf16 %v339
      %v356 = vunpack.c.l.bf16 %v340
      %v357 = vunpack.c.l.bf16 %v341
      %v358 = vunpack.c.l.bf16 %v342
      %v359 = vunpack.c.l.bf16 %v343
      %v360 = vunpack.c.l.bf16 %v344
      %v361 = vunpack.c.l.bf16 %v345
      %s362 = scalar_lea.vmem %s237, 1
      %v363 = vld [vmem:[%s362] sm:$0x1]
      %v365 = vperm.slane %v363, 0
      %v367 = vmul.f32 %v346, %v365
      %v368 = vmul.f32 %v347, %v365
      %v369 = vmul.f32 %v348, %v365
      %v370 = vmul.f32 %v349, %v365
      %v371 = vmul.f32 %v350, %v365
      %v372 = vmul.f32 %v351, %v365
      %v373 = vmul.f32 %v352, %v365
      %v374 = vmul.f32 %v353, %v365
      %v375 = vmul.f32 %v354, %v365
      %v376 = vmul.f32 %v355, %v365
      %v377 = vmul.f32 %v356, %v365
      %v378 = vmul.f32 %v357, %v365
      %v379 = vmul.f32 %v358, %v365
      %v380 = vmul.f32 %v359, %v365
      %v381 = vmul.f32 %v360, %v365
      %v382 = vmul.f32 %v361, %v365
      %v383 = vadd.f32 %v311, %v367
      %v384 = vadd.f32 %v312, %v368
      %v385 = vadd.f32 %v313, %v369
      %v386 = vadd.f32 %v314, %v370
      %v387 = vadd.f32 %v315, %v371
      %v388 = vadd.f32 %v316, %v372
      %v389 = vadd.f32 %v317, %v373
      %v390 = vadd.f32 %v318, %v374
      %v391 = vadd.f32 %v319, %v375
      %v392 = vadd.f32 %v320, %v376
      %v393 = vadd.f32 %v321, %v377
      %v394 = vadd.f32 %v322, %v378
      %v395 = vadd.f32 %v323, %v379
      %v396 = vadd.f32 %v324, %v380
      %v397 = vadd.f32 %v325, %v381
      %v398 = vadd.f32 %v326, %v382
      %v399 = vld [vmem:[%s258 + $0x8] sm:$0x1]
      %v400 = vld [vmem:[%s258 + $0x1c] sm:$0x1]
      %v401 = vld [vmem:[%s258 + $0x30] sm:$0x1]
      %v402 = vld [vmem:[%s258 + $0x44] sm:$0x1]
      %v403 = vld [vmem:[%s258 + $0x58] sm:$0x1]
      %v404 = vld [vmem:[%s258 + $0x6c] sm:$0x1]
      %v405 = vld [vmem:[%s258 + $0x80] sm:$0x1]
      %v406 = vld [vmem:[%s258 + $0x94] sm:$0x1]
      %v407 = vunpack.c.l.bf16 %v399
      %v408 = vunpack.c.l.bf16 %v400
      %v409 = vunpack.c.l.bf16 %v401
      %v410 = vunpack.c.l.bf16 %v402
      %v411 = vunpack.c.l.bf16 %v403
      %v412 = vunpack.c.l.bf16 %v404
      %v413 = vunpack.c.l.bf16 %v405
      %v414 = vunpack.c.l.bf16 %v406
      %s415 = scalar_lea.vmem %s237, 2
      %v416 = vld [vmem:[%s415] sm:$0x1]
      %v418 = vperm.slane %v416, 0
      %v420 = vmul.f32 %v275, %v418
      %v421 = vmul.f32 %v276, %v418
      %v422 = vmul.f32 %v407, %v418
      %v423 = vmul.f32 %v277, %v418
      %v424 = vmul.f32 %v278, %v418
      %v425 = vmul.f32 %v408, %v418
      %v426 = vmul.f32 %v279, %v418
      %v427 = vmul.f32 %v280, %v418
      %v428 = vmul.f32 %v409, %v418
      %v429 = vmul.f32 %v281, %v418
      %v430 = vmul.f32 %v282, %v418
      %v431 = vmul.f32 %v410, %v418
      %v432 = vmul.f32 %v283, %v418
      %v433 = vmul.f32 %v284, %v418
      %v434 = vmul.f32 %v411, %v418
      %v435 = vmul.f32 %v285, %v418
      %v436 = vmul.f32 %v286, %v418
      %v437 = vmul.f32 %v412, %v418
      %v438 = vmul.f32 %v287, %v418
      %v439 = vmul.f32 %v288, %v418
      %v440 = vmul.f32 %v413, %v418
      %v441 = vmul.f32 %v289, %v418
      %v442 = vmul.f32 %v290, %v418
      %v443 = vmul.f32 %v414, %v418
      %vm468 = vcmask 1046528
      %v469 = vrot.slane %v420, 1
      %v470 = vrot.slane %v421, 1
      %v471 = vsel %vm468, %v469, %v470
      %v472 = vrot.slane %v422, 1
      %v473 = vsel %vm468, %v470, %v472
      %v474 = vrot.slane %v423, 1
      %v475 = vrot.slane %v424, 1
      %v476 = vsel %vm468, %v474, %v475
      %v477 = vrot.slane %v425, 1
      %v478 = vsel %vm468, %v475, %v477
      %v479 = vrot.slane %v426, 1
      %v480 = vrot.slane %v427, 1
      %v481 = vsel %vm468, %v479, %v480
      %v482 = vrot.slane %v428, 1
      %v483 = vsel %vm468, %v480, %v482
      %v484 = vrot.slane %v429, 1
      %v485 = vrot.slane %v430, 1
      %v486 = vsel %vm468, %v484, %v485
      %v487 = vrot.slane %v431, 1
      %v488 = vsel %vm468, %v485, %v487
      %v489 = vrot.slane %v432, 1
      %v490 = vrot.slane %v433, 1
      %v491 = vsel %vm468, %v489, %v490
      %v492 = vrot.slane %v434, 1
      %v493 = vsel %vm468, %v490, %v492
      %v494 = vrot.slane %v435, 1
      %v495 = vrot.slane %v436, 1
      %v496 = vsel %vm468, %v494, %v495
      %v497 = vrot.slane %v437, 1
      %v498 = vsel %vm468, %v495, %v497
      %v499 = vrot.slane %v438, 1
      %v500 = vrot.slane %v439, 1
      %v501 = vsel %vm468, %v499, %v500
      %v502 = vrot.slane %v440, 1
      %v503 = vsel %vm468, %v500, %v502
      %v504 = vrot.slane %v441, 1
      %v505 = vrot.slane %v442, 1
      %v506 = vsel %vm468, %v504, %v505
      %v507 = vrot.slane %v443, 1
      %v508 = vsel %vm468, %v505, %v507
      %v525 = vadd.f32 %v383, %v471
      %v526 = vadd.f32 %v384, %v473
      %v527 = vadd.f32 %v385, %v476
      %v528 = vadd.f32 %v386, %v478
      %v529 = vadd.f32 %v387, %v481
      %v530 = vadd.f32 %v388, %v483
      %v531 = vadd.f32 %v389, %v486
      %v532 = vadd.f32 %v390, %v488
      %v533 = vadd.f32 %v391, %v491
      %v534 = vadd.f32 %v392, %v493
      %v535 = vadd.f32 %v393, %v496
      %v536 = vadd.f32 %v394, %v498
      %v537 = vadd.f32 %v395, %v501
      %v538 = vadd.f32 %v396, %v503
      %v539 = vadd.f32 %v397, %v506
      %v540 = vadd.f32 %v398, %v508
      %s541 = sadd.s32 %s256, 330
      %s542 = smul.addr %s541, 4
      %s543 = scalar_lea.vmem %s233, %s542
      %v544 = vld [vmem:[%s543] sm:$0xf]
      %v545 = vld [vmem:[%s543 + $0x4] sm:$0xf]
      %v546 = vld [vmem:[%s543 + $0x14] sm:$0xf]
      %v547 = vld [vmem:[%s543 + $0x18] sm:$0xf]
      %v548 = vld [vmem:[%s543 + $0x28] sm:$0xf]
      %v549 = vld [vmem:[%s543 + $0x2c] sm:$0xf]
      %v550 = vld [vmem:[%s543 + $0x3c] sm:$0xf]
      %v551 = vld [vmem:[%s543 + $0x40] sm:$0xf]
      %v552 = vld [vmem:[%s543 + $0x50] sm:$0xf]
      %v553 = vld [vmem:[%s543 + $0x54] sm:$0xf]
      %v554 = vld [vmem:[%s543 + $0x64] sm:$0xf]
      %v555 = vld [vmem:[%s543 + $0x68] sm:$0xf]
      %v556 = vld [vmem:[%s543 + $0x78] sm:$0xf]
      %v557 = vld [vmem:[%s543 + $0x7c] sm:$0xf]
      %v558 = vld [vmem:[%s543 + $0x8c] sm:$0xf]
      %v559 = vld [vmem:[%s543 + $0x90] sm:$0xf]
      %v560 = vunpack.c.l.bf16 %v544
      %v561 = vunpack.c.l.bf16 %v545
      %v562 = vunpack.c.l.bf16 %v546
      %v563 = vunpack.c.l.bf16 %v547
      %v564 = vunpack.c.l.bf16 %v548
      %v565 = vunpack.c.l.bf16 %v549
      %v566 = vunpack.c.l.bf16 %v550
      %v567 = vunpack.c.l.bf16 %v551
      %v568 = vunpack.c.l.bf16 %v552
      %v569 = vunpack.c.l.bf16 %v553
      %v570 = vunpack.c.l.bf16 %v554
      %v571 = vunpack.c.l.bf16 %v555
      %v572 = vunpack.c.l.bf16 %v556
      %v573 = vunpack.c.l.bf16 %v557
      %v574 = vunpack.c.l.bf16 %v558
      %v575 = vunpack.c.l.bf16 %v559
      %s576 = scalar_lea.vmem %s237, 3
      %v577 = vld [vmem:[%s576] sm:$0x1]
      %v579 = vperm.slane %v577, 0
      %v581 = vmul.f32 %v560, %v579
      %v582 = vmul.f32 %v561, %v579
      %v583 = vmul.f32 %v562, %v579
      %v584 = vmul.f32 %v563, %v579
      %v585 = vmul.f32 %v564, %v579
      %v586 = vmul.f32 %v565, %v579
      %v587 = vmul.f32 %v566, %v579
      %v588 = vmul.f32 %v567, %v579
      %v589 = vmul.f32 %v568, %v579
      %v590 = vmul.f32 %v569, %v579
      %v591 = vmul.f32 %v570, %v579
      %v592 = vmul.f32 %v571, %v579
      %v593 = vmul.f32 %v572, %v579
      %v594 = vmul.f32 %v573, %v579
      %v595 = vmul.f32 %v574, %v579
      %v596 = vmul.f32 %v575, %v579
      %v597 = vadd.f32 %v525, %v581
      %v598 = vadd.f32 %v526, %v582
      %v599 = vadd.f32 %v527, %v583
      %v600 = vadd.f32 %v528, %v584
      %v601 = vadd.f32 %v529, %v585
      %v602 = vadd.f32 %v530, %v586
      %v603 = vadd.f32 %v531, %v587
      %v604 = vadd.f32 %v532, %v588
      %v605 = vadd.f32 %v533, %v589
      %v606 = vadd.f32 %v534, %v590
      %v607 = vadd.f32 %v535, %v591
      %v608 = vadd.f32 %v536, %v592
      %v609 = vadd.f32 %v537, %v593
      %v610 = vadd.f32 %v538, %v594
      %v611 = vadd.f32 %v539, %v595
      %v612 = vadd.f32 %v540, %v596
      %s613 = sadd.s32 %s256, 495
      %s614 = smul.addr %s613, 4
      %s615 = scalar_lea.vmem %s233, %s614
      %v616 = vld [vmem:[%s615] sm:$0xf]
      %v617 = vld [vmem:[%s615 + $0x4] sm:$0xf]
      %v618 = vld [vmem:[%s615 + $0x14] sm:$0xf]
      %v619 = vld [vmem:[%s615 + $0x18] sm:$0xf]
      %v620 = vld [vmem:[%s615 + $0x28] sm:$0xf]
      %v621 = vld [vmem:[%s615 + $0x2c] sm:$0xf]
      %v622 = vld [vmem:[%s615 + $0x3c] sm:$0xf]
      %v623 = vld [vmem:[%s615 + $0x40] sm:$0xf]
      %v624 = vld [vmem:[%s615 + $0x50] sm:$0xf]
      %v625 = vld [vmem:[%s615 + $0x54] sm:$0xf]
      %v626 = vld [vmem:[%s615 + $0x64] sm:$0xf]
      %v627 = vld [vmem:[%s615 + $0x68] sm:$0xf]
      %v628 = vld [vmem:[%s615 + $0x78] sm:$0xf]
      %v629 = vld [vmem:[%s615 + $0x7c] sm:$0xf]
      %v630 = vld [vmem:[%s615 + $0x8c] sm:$0xf]
      %v631 = vld [vmem:[%s615 + $0x90] sm:$0xf]
      %v632 = vunpack.c.l.bf16 %v616
      %v633 = vunpack.c.l.bf16 %v617
      %v634 = vunpack.c.l.bf16 %v618
      %v635 = vunpack.c.l.bf16 %v619
      %v636 = vunpack.c.l.bf16 %v620
      %v637 = vunpack.c.l.bf16 %v621
      %v638 = vunpack.c.l.bf16 %v622
      %v639 = vunpack.c.l.bf16 %v623
      %v640 = vunpack.c.l.bf16 %v624
      %v641 = vunpack.c.l.bf16 %v625
      %v642 = vunpack.c.l.bf16 %v626
      %v643 = vunpack.c.l.bf16 %v627
      %v644 = vunpack.c.l.bf16 %v628
      %v645 = vunpack.c.l.bf16 %v629
      %v646 = vunpack.c.l.bf16 %v630
      %v647 = vunpack.c.l.bf16 %v631
      %s648 = scalar_lea.vmem %s237, 4
      %v649 = vld [vmem:[%s648] sm:$0x1]
      %v651 = vperm.slane %v649, 0
      %v653 = vmul.f32 %v632, %v651
      %v654 = vmul.f32 %v633, %v651
      %v655 = vmul.f32 %v634, %v651
      %v656 = vmul.f32 %v635, %v651
      %v657 = vmul.f32 %v636, %v651
      %v658 = vmul.f32 %v637, %v651
      %v659 = vmul.f32 %v638, %v651
      %v660 = vmul.f32 %v639, %v651
      %v661 = vmul.f32 %v640, %v651
      %v662 = vmul.f32 %v641, %v651
      %v663 = vmul.f32 %v642, %v651
      %v664 = vmul.f32 %v643, %v651
      %v665 = vmul.f32 %v644, %v651
      %v666 = vmul.f32 %v645, %v651
      %v667 = vmul.f32 %v646, %v651
      %v668 = vmul.f32 %v647, %v651
      %v669 = vadd.f32 %v597, %v653
      %v670 = vadd.f32 %v598, %v654
      %v671 = vadd.f32 %v599, %v655
      %v672 = vadd.f32 %v600, %v656
      %v673 = vadd.f32 %v601, %v657
      %v674 = vadd.f32 %v602, %v658
      %v675 = vadd.f32 %v603, %v659
      %v676 = vadd.f32 %v604, %v660
      %v677 = vadd.f32 %v605, %v661
      %v678 = vadd.f32 %v606, %v662
      %v679 = vadd.f32 %v607, %v663
      %v680 = vadd.f32 %v608, %v664
      %v681 = vadd.f32 %v609, %v665
      %v682 = vadd.f32 %v610, %v666
      %v683 = vadd.f32 %v611, %v667
      %v684 = vadd.f32 %v612, %v668
      %v685 = vld [vmem:[%s543 + $0x8] sm:$0x1]
      %v686 = vld [vmem:[%s543 + $0x1c] sm:$0x1]
      %v687 = vld [vmem:[%s543 + $0x30] sm:$0x1]
      %v688 = vld [vmem:[%s543 + $0x44] sm:$0x1]
      %v689 = vld [vmem:[%s543 + $0x58] sm:$0x1]
      %v690 = vld [vmem:[%s543 + $0x6c] sm:$0x1]
      %v691 = vld [vmem:[%s543 + $0x80] sm:$0x1]
      %v692 = vld [vmem:[%s543 + $0x94] sm:$0x1]
      %v693 = vunpack.c.l.bf16 %v685
      %v694 = vunpack.c.l.bf16 %v686
      %v695 = vunpack.c.l.bf16 %v687
      %v696 = vunpack.c.l.bf16 %v688
      %v697 = vunpack.c.l.bf16 %v689
      %v698 = vunpack.c.l.bf16 %v690
      %v699 = vunpack.c.l.bf16 %v691
      %v700 = vunpack.c.l.bf16 %v692
      %s701 = scalar_lea.vmem %s237, 5
      %v702 = vld [vmem:[%s701] sm:$0x1]
      %v704 = vperm.slane %v702, 0
      %v706 = vmul.f32 %v560, %v704
      %v707 = vmul.f32 %v561, %v704
      %v708 = vmul.f32 %v693, %v704
      %v709 = vmul.f32 %v562, %v704
      %v710 = vmul.f32 %v563, %v704
      %v711 = vmul.f32 %v694, %v704
      %v712 = vmul.f32 %v564, %v704
      %v713 = vmul.f32 %v565, %v704
      %v714 = vmul.f32 %v695, %v704
      %v715 = vmul.f32 %v566, %v704
      %v716 = vmul.f32 %v567, %v704
      %v717 = vmul.f32 %v696, %v704
      %v718 = vmul.f32 %v568, %v704
      %v719 = vmul.f32 %v569, %v704
      %v720 = vmul.f32 %v697, %v704
      %v721 = vmul.f32 %v570, %v704
      %v722 = vmul.f32 %v571, %v704
      %v723 = vmul.f32 %v698, %v704
      %v724 = vmul.f32 %v572, %v704
      %v725 = vmul.f32 %v573, %v704
      %v726 = vmul.f32 %v699, %v704
      %v727 = vmul.f32 %v574, %v704
      %v728 = vmul.f32 %v575, %v704
      %v729 = vmul.f32 %v700, %v704
      %v754 = vrot.slane %v706, 1
      %v755 = vrot.slane %v707, 1
      %v756 = vsel %vm468, %v754, %v755
      %v757 = vrot.slane %v708, 1
      %v758 = vsel %vm468, %v755, %v757
      %v759 = vrot.slane %v709, 1
      %v760 = vrot.slane %v710, 1
      %v761 = vsel %vm468, %v759, %v760
      %v762 = vrot.slane %v711, 1
      %v763 = vsel %vm468, %v760, %v762
      %v764 = vrot.slane %v712, 1
      %v765 = vrot.slane %v713, 1
      %v766 = vsel %vm468, %v764, %v765
      %v767 = vrot.slane %v714, 1
      %v768 = vsel %vm468, %v765, %v767
      %v769 = vrot.slane %v715, 1
      %v770 = vrot.slane %v716, 1
      %v771 = vsel %vm468, %v769, %v770
      %v772 = vrot.slane %v717, 1
      %v773 = vsel %vm468, %v770, %v772
      %v774 = vrot.slane %v718, 1
      %v775 = vrot.slane %v719, 1
      %v776 = vsel %vm468, %v774, %v775
      %v777 = vrot.slane %v720, 1
      %v778 = vsel %vm468, %v775, %v777
      %v779 = vrot.slane %v721, 1
      %v780 = vrot.slane %v722, 1
      %v781 = vsel %vm468, %v779, %v780
      %v782 = vrot.slane %v723, 1
      %v783 = vsel %vm468, %v780, %v782
      %v784 = vrot.slane %v724, 1
      %v785 = vrot.slane %v725, 1
      %v786 = vsel %vm468, %v784, %v785
      %v787 = vrot.slane %v726, 1
      %v788 = vsel %vm468, %v785, %v787
      %v789 = vrot.slane %v727, 1
      %v790 = vrot.slane %v728, 1
      %v791 = vsel %vm468, %v789, %v790
      %v792 = vrot.slane %v729, 1
      %v793 = vsel %vm468, %v790, %v792
      %v810 = vadd.f32 %v669, %v756
      %v811 = vadd.f32 %v670, %v758
      %v812 = vadd.f32 %v671, %v761
      %v813 = vadd.f32 %v672, %v763
      %v814 = vadd.f32 %v673, %v766
      %v815 = vadd.f32 %v674, %v768
      %v816 = vadd.f32 %v675, %v771
      %v817 = vadd.f32 %v676, %v773
      %v818 = vadd.f32 %v677, %v776
      %v819 = vadd.f32 %v678, %v778
      %v820 = vadd.f32 %v679, %v781
      %v821 = vadd.f32 %v680, %v783
      %v822 = vadd.f32 %v681, %v786
      %v823 = vadd.f32 %v682, %v788
      %v824 = vadd.f32 %v683, %v791
      %v825 = vadd.f32 %v684, %v793
      %s826 = sadd.s32 %s255, 1
      %s827 = smul.u32 %s826, 5
      %s828 = smul.addr %s827, 4
      %s829 = scalar_lea.vmem %s233, %s828
      %v830 = vld [vmem:[%s829] sm:$0xf]
      %v831 = vld [vmem:[%s829 + $0x4] sm:$0xf]
      %v832 = vld [vmem:[%s829 + $0x14] sm:$0xf]
      %v833 = vld [vmem:[%s829 + $0x18] sm:$0xf]
      %v834 = vld [vmem:[%s829 + $0x28] sm:$0xf]
      %v835 = vld [vmem:[%s829 + $0x2c] sm:$0xf]
      %v836 = vld [vmem:[%s829 + $0x3c] sm:$0xf]
      %v837 = vld [vmem:[%s829 + $0x40] sm:$0xf]
      %v838 = vld [vmem:[%s829 + $0x50] sm:$0xf]
      %v839 = vld [vmem:[%s829 + $0x54] sm:$0xf]
      %v840 = vld [vmem:[%s829 + $0x64] sm:$0xf]
      %v841 = vld [vmem:[%s829 + $0x68] sm:$0xf]
      %v842 = vld [vmem:[%s829 + $0x78] sm:$0xf]
      %v843 = vld [vmem:[%s829 + $0x7c] sm:$0xf]
      %v844 = vld [vmem:[%s829 + $0x8c] sm:$0xf]
      %v845 = vld [vmem:[%s829 + $0x90] sm:$0xf]
      %v846 = vunpack.c.l.bf16 %v830
      %v847 = vunpack.c.l.bf16 %v831
      %v848 = vunpack.c.l.bf16 %v832
      %v849 = vunpack.c.l.bf16 %v833
      %v850 = vunpack.c.l.bf16 %v834
      %v851 = vunpack.c.l.bf16 %v835
      %v852 = vunpack.c.l.bf16 %v836
      %v853 = vunpack.c.l.bf16 %v837
      %v854 = vunpack.c.l.bf16 %v838
      %v855 = vunpack.c.l.bf16 %v839
      %v856 = vunpack.c.l.bf16 %v840
      %v857 = vunpack.c.l.bf16 %v841
      %v858 = vunpack.c.l.bf16 %v842
      %v859 = vunpack.c.l.bf16 %v843
      %v860 = vunpack.c.l.bf16 %v844
      %v861 = vunpack.c.l.bf16 %v845
      %s862 = scalar_lea.vmem %s237, 6
      %v863 = vld [vmem:[%s862] sm:$0x1]
      %v865 = vperm.slane %v863, 0
      %v867 = vmul.f32 %v846, %v865
      %v868 = vmul.f32 %v847, %v865
      %v869 = vmul.f32 %v848, %v865
      %v870 = vmul.f32 %v849, %v865
      %v871 = vmul.f32 %v850, %v865
      %v872 = vmul.f32 %v851, %v865
      %v873 = vmul.f32 %v852, %v865
      %v874 = vmul.f32 %v853, %v865
      %v875 = vmul.f32 %v854, %v865
      %v876 = vmul.f32 %v855, %v865
      %v877 = vmul.f32 %v856, %v865
      %v878 = vmul.f32 %v857, %v865
      %v879 = vmul.f32 %v858, %v865
      %v880 = vmul.f32 %v859, %v865
      %v881 = vmul.f32 %v860, %v865
      %v882 = vmul.f32 %v861, %v865
      %v883 = vadd.f32 %v810, %v867
      %v884 = vadd.f32 %v811, %v868
      %v885 = vadd.f32 %v812, %v869
      %v886 = vadd.f32 %v813, %v870
      %v887 = vadd.f32 %v814, %v871
      %v888 = vadd.f32 %v815, %v872
      %v889 = vadd.f32 %v816, %v873
      %v890 = vadd.f32 %v817, %v874
      %v891 = vadd.f32 %v818, %v875
      %v892 = vadd.f32 %v819, %v876
      %v893 = vadd.f32 %v820, %v877
      %v894 = vadd.f32 %v821, %v878
      %v895 = vadd.f32 %v822, %v879
      %v896 = vadd.f32 %v823, %v880
      %v897 = vadd.f32 %v824, %v881
      %v898 = vadd.f32 %v825, %v882
      %s899 = sadd.s32 %s827, 165
      %s900 = smul.addr %s899, 4
      %s901 = scalar_lea.vmem %s233, %s900
      %v902 = vld [vmem:[%s901] sm:$0xf]
      %v903 = vld [vmem:[%s901 + $0x4] sm:$0xf]
      %v904 = vld [vmem:[%s901 + $0x14] sm:$0xf]
      %v905 = vld [vmem:[%s901 + $0x18] sm:$0xf]
      %v906 = vld [vmem:[%s901 + $0x28] sm:$0xf]
      %v907 = vld [vmem:[%s901 + $0x2c] sm:$0xf]
      %v908 = vld [vmem:[%s901 + $0x3c] sm:$0xf]
      %v909 = vld [vmem:[%s901 + $0x40] sm:$0xf]
      %v910 = vld [vmem:[%s901 + $0x50] sm:$0xf]
      %v911 = vld [vmem:[%s901 + $0x54] sm:$0xf]
      %v912 = vld [vmem:[%s901 + $0x64] sm:$0xf]
      %v913 = vld [vmem:[%s901 + $0x68] sm:$0xf]
      %v914 = vld [vmem:[%s901 + $0x78] sm:$0xf]
      %v915 = vld [vmem:[%s901 + $0x7c] sm:$0xf]
      %v916 = vld [vmem:[%s901 + $0x8c] sm:$0xf]
      %v917 = vld [vmem:[%s901 + $0x90] sm:$0xf]
      %v918 = vunpack.c.l.bf16 %v902
      %v919 = vunpack.c.l.bf16 %v903
      %v920 = vunpack.c.l.bf16 %v904
      %v921 = vunpack.c.l.bf16 %v905
      %v922 = vunpack.c.l.bf16 %v906
      %v923 = vunpack.c.l.bf16 %v907
      %v924 = vunpack.c.l.bf16 %v908
      %v925 = vunpack.c.l.bf16 %v909
      %v926 = vunpack.c.l.bf16 %v910
      %v927 = vunpack.c.l.bf16 %v911
      %v928 = vunpack.c.l.bf16 %v912
      %v929 = vunpack.c.l.bf16 %v913
      %v930 = vunpack.c.l.bf16 %v914
      %v931 = vunpack.c.l.bf16 %v915
      %v932 = vunpack.c.l.bf16 %v916
      %v933 = vunpack.c.l.bf16 %v917
      %s934 = scalar_lea.vmem %s237, 7
      %v935 = vld [vmem:[%s934] sm:$0x1]
      %v937 = vperm.slane %v935, 0
      %v939 = vmul.f32 %v918, %v937
      %v940 = vmul.f32 %v919, %v937
      %v941 = vmul.f32 %v920, %v937
      %v942 = vmul.f32 %v921, %v937
      %v943 = vmul.f32 %v922, %v937
      %v944 = vmul.f32 %v923, %v937
      %v945 = vmul.f32 %v924, %v937
      %v946 = vmul.f32 %v925, %v937
      %v947 = vmul.f32 %v926, %v937
      %v948 = vmul.f32 %v927, %v937
      %v949 = vmul.f32 %v928, %v937
      %v950 = vmul.f32 %v929, %v937
      %v951 = vmul.f32 %v930, %v937
      %v952 = vmul.f32 %v931, %v937
      %v953 = vmul.f32 %v932, %v937
      %v954 = vmul.f32 %v933, %v937
      %v955 = vadd.f32 %v883, %v939
      %v956 = vadd.f32 %v884, %v940
      %v957 = vadd.f32 %v885, %v941
      %v958 = vadd.f32 %v886, %v942
      %v959 = vadd.f32 %v887, %v943
      %v960 = vadd.f32 %v888, %v944
      %v961 = vadd.f32 %v889, %v945
      %v962 = vadd.f32 %v890, %v946
      %v963 = vadd.f32 %v891, %v947
      %v964 = vadd.f32 %v892, %v948
      %v965 = vadd.f32 %v893, %v949
      %v966 = vadd.f32 %v894, %v950
      %v967 = vadd.f32 %v895, %v951
      %v968 = vadd.f32 %v896, %v952
      %v969 = vadd.f32 %v897, %v953
      %v970 = vadd.f32 %v898, %v954
      %v971 = vld [vmem:[%s829 + $0x8] sm:$0x1]
      %v972 = vld [vmem:[%s829 + $0x1c] sm:$0x1]
      %v973 = vld [vmem:[%s829 + $0x30] sm:$0x1]
      %v974 = vld [vmem:[%s829 + $0x44] sm:$0x1]
      %v975 = vld [vmem:[%s829 + $0x58] sm:$0x1]
      %v976 = vld [vmem:[%s829 + $0x6c] sm:$0x1]
      %v977 = vld [vmem:[%s829 + $0x80] sm:$0x1]
      %v978 = vld [vmem:[%s829 + $0x94] sm:$0x1]
      %v979 = vunpack.c.l.bf16 %v971
      %v980 = vunpack.c.l.bf16 %v972
      %v981 = vunpack.c.l.bf16 %v973
      %v982 = vunpack.c.l.bf16 %v974
      %v983 = vunpack.c.l.bf16 %v975
      %v984 = vunpack.c.l.bf16 %v976
      %v985 = vunpack.c.l.bf16 %v977
      %v986 = vunpack.c.l.bf16 %v978
      %s987 = scalar_lea.vmem %s237, 8
      %v988 = vld [vmem:[%s987] sm:$0x1]
      %v990 = vperm.slane %v988, 0
      %v992 = vmul.f32 %v846, %v990
      %v993 = vmul.f32 %v847, %v990
      %v994 = vmul.f32 %v979, %v990
      %v995 = vmul.f32 %v848, %v990
      %v996 = vmul.f32 %v849, %v990
      %v997 = vmul.f32 %v980, %v990
      %v998 = vmul.f32 %v850, %v990
      %v999 = vmul.f32 %v851, %v990
      %v1000 = vmul.f32 %v981, %v990
      %v1001 = vmul.f32 %v852, %v990
      %v1002 = vmul.f32 %v853, %v990
      %v1003 = vmul.f32 %v982, %v990
      %v1004 = vmul.f32 %v854, %v990
      %v1005 = vmul.f32 %v855, %v990
      %v1006 = vmul.f32 %v983, %v990
      %v1007 = vmul.f32 %v856, %v990
      %v1008 = vmul.f32 %v857, %v990
      %v1009 = vmul.f32 %v984, %v990
      %v1010 = vmul.f32 %v858, %v990
      %v1011 = vmul.f32 %v859, %v990
      %v1012 = vmul.f32 %v985, %v990
      %v1013 = vmul.f32 %v860, %v990
      %v1014 = vmul.f32 %v861, %v990
      %v1015 = vmul.f32 %v986, %v990
      %v1040 = vrot.slane %v992, 1
      %v1041 = vrot.slane %v993, 1
      %v1042 = vsel %vm468, %v1040, %v1041
      %v1043 = vrot.slane %v994, 1
      %v1044 = vsel %vm468, %v1041, %v1043
      %v1045 = vrot.slane %v995, 1
      %v1046 = vrot.slane %v996, 1
      %v1047 = vsel %vm468, %v1045, %v1046
      %v1048 = vrot.slane %v997, 1
      %v1049 = vsel %vm468, %v1046, %v1048
      %v1050 = vrot.slane %v998, 1
      %v1051 = vrot.slane %v999, 1
      %v1052 = vsel %vm468, %v1050, %v1051
      %v1053 = vrot.slane %v1000, 1
      %v1054 = vsel %vm468, %v1051, %v1053
      %v1055 = vrot.slane %v1001, 1
      %v1056 = vrot.slane %v1002, 1
      %v1057 = vsel %vm468, %v1055, %v1056
      %v1058 = vrot.slane %v1003, 1
      %v1059 = vsel %vm468, %v1056, %v1058
      %v1060 = vrot.slane %v1004, 1
      %v1061 = vrot.slane %v1005, 1
      %v1062 = vsel %vm468, %v1060, %v1061
      %v1063 = vrot.slane %v1006, 1
      %v1064 = vsel %vm468, %v1061, %v1063
      %v1065 = vrot.slane %v1007, 1
      %v1066 = vrot.slane %v1008, 1
      %v1067 = vsel %vm468, %v1065, %v1066
      %v1068 = vrot.slane %v1009, 1
      %v1069 = vsel %vm468, %v1066, %v1068
      %v1070 = vrot.slane %v1010, 1
      %v1071 = vrot.slane %v1011, 1
      %v1072 = vsel %vm468, %v1070, %v1071
      %v1073 = vrot.slane %v1012, 1
      %v1074 = vsel %vm468, %v1071, %v1073
      %v1075 = vrot.slane %v1013, 1
      %v1076 = vrot.slane %v1014, 1
      %v1077 = vsel %vm468, %v1075, %v1076
      %v1078 = vrot.slane %v1015, 1
      %v1079 = vsel %vm468, %v1076, %v1078
      %v1096 = vadd.f32 %v955, %v1042
      %v1097 = vadd.f32 %v956, %v1044
      %v1098 = vadd.f32 %v957, %v1047
      %v1099 = vadd.f32 %v958, %v1049
      %v1100 = vadd.f32 %v959, %v1052
      %v1101 = vadd.f32 %v960, %v1054
      %v1102 = vadd.f32 %v961, %v1057
      %v1103 = vadd.f32 %v962, %v1059
      %v1104 = vadd.f32 %v963, %v1062
      %v1105 = vadd.f32 %v964, %v1064
      %v1106 = vadd.f32 %v965, %v1067
      %v1107 = vadd.f32 %v966, %v1069
      %v1108 = vadd.f32 %v967, %v1072
      %v1109 = vadd.f32 %v968, %v1074
      %v1110 = vadd.f32 %v969, %v1077
      %v1111 = vadd.f32 %v970, %v1079
      %v1112 = vld [vmem:[%s240] sm:$0x1]
      %v1114 = vperm.slane %v1112, 0
      %v1116 = vmul.f32 %v1096, %v1114
      %v1117 = vmul.f32 %v1097, %v1114
      %v1118 = vmul.f32 %v1098, %v1114
      %v1119 = vmul.f32 %v1099, %v1114
      %v1120 = vmul.f32 %v1100, %v1114
      %v1121 = vmul.f32 %v1101, %v1114
      %v1122 = vmul.f32 %v1102, %v1114
      %v1123 = vmul.f32 %v1103, %v1114
      %v1124 = vmul.f32 %v1104, %v1114
      %v1125 = vmul.f32 %v1105, %v1114
      %v1126 = vmul.f32 %v1106, %v1114
      %v1127 = vmul.f32 %v1107, %v1114
      %v1128 = vmul.f32 %v1108, %v1114
      %v1129 = vmul.f32 %v1109, %v1114
      %v1130 = vmul.f32 %v1110, %v1114
      %v1131 = vmul.f32 %v1111, %v1114
      %s1132 = scalar_lea.vmem %s240, 1
      %v1133 = vld [vmem:[%s1132] sm:$0x1]
      %v1135 = vperm.slane %v1133, 0
      %v1137 = vadd.f32 %v1116, %v1135
      %v1138 = vadd.f32 %v1117, %v1135
      %v1139 = vadd.f32 %v1118, %v1135
      %v1140 = vadd.f32 %v1119, %v1135
      %v1141 = vadd.f32 %v1120, %v1135
      %v1142 = vadd.f32 %v1121, %v1135
      %v1143 = vadd.f32 %v1122, %v1135
      %v1144 = vadd.f32 %v1123, %v1135
      %v1145 = vadd.f32 %v1124, %v1135
      %v1146 = vadd.f32 %v1125, %v1135
      %v1147 = vadd.f32 %v1126, %v1135
      %v1148 = vadd.f32 %v1127, %v1135
      %v1149 = vadd.f32 %v1128, %v1135
      %v1150 = vadd.f32 %v1129, %v1135
      %v1151 = vadd.f32 %v1130, %v1135
      %v1152 = vadd.f32 %v1131, %v1135
      %v1153 = vpack.c.bf16 %v1137, %v1137
      %v1154 = vpack.c.bf16 %v1138, %v1138
      %v1155 = vpack.c.bf16 %v1139, %v1139
      %v1156 = vpack.c.bf16 %v1140, %v1140
      %v1157 = vpack.c.bf16 %v1141, %v1141
      %v1158 = vpack.c.bf16 %v1142, %v1142
      %v1159 = vpack.c.bf16 %v1143, %v1143
      %v1160 = vpack.c.bf16 %v1144, %v1144
      %v1161 = vpack.c.bf16 %v1145, %v1145
      %v1162 = vpack.c.bf16 %v1146, %v1146
      %v1163 = vpack.c.bf16 %v1147, %v1147
      %v1164 = vpack.c.bf16 %v1148, %v1148
      %v1165 = vpack.c.bf16 %v1149, %v1149
      %v1166 = vpack.c.bf16 %v1150, %v1150
      %v1167 = vpack.c.bf16 %v1151, %v1151
      %v1168 = vpack.c.bf16 %v1152, %v1152
      %vm1169 = vcmask 19456
      %1170 = vst.msk [vmem:[%s253] sm:$0xf] %vm1169, %v1153
      %1171 = vst.msk [vmem:[%s253 + $0x4] sm:$0xf] %vm1169, %v1154
      %1172 = vst.msk [vmem:[%s253 + $0x10] sm:$0xf] %vm1169, %v1155
      %1173 = vst.msk [vmem:[%s253 + $0x14] sm:$0xf] %vm1169, %v1156
      %1174 = vst.msk [vmem:[%s253 + $0x20] sm:$0xf] %vm1169, %v1157
      %1175 = vst.msk [vmem:[%s253 + $0x24] sm:$0xf] %vm1169, %v1158
      %1176 = vst.msk [vmem:[%s253 + $0x30] sm:$0xf] %vm1169, %v1159
      %1177 = vst.msk [vmem:[%s253 + $0x34] sm:$0xf] %vm1169, %v1160
      %1178 = vst.msk [vmem:[%s253 + $0x40] sm:$0xf] %vm1169, %v1161
      %1179 = vst.msk [vmem:[%s253 + $0x44] sm:$0xf] %vm1169, %v1162
      %1180 = vst.msk [vmem:[%s253 + $0x50] sm:$0xf] %vm1169, %v1163
      %1181 = vst.msk [vmem:[%s253 + $0x54] sm:$0xf] %vm1169, %v1164
      %1182 = vst.msk [vmem:[%s253 + $0x60] sm:$0xf] %vm1169, %v1165
      %1183 = vst.msk [vmem:[%s253 + $0x64] sm:$0xf] %vm1169, %v1166
      %1184 = vst.msk [vmem:[%s253 + $0x70] sm:$0xf] %vm1169, %v1167
      %1185 = vst.msk [vmem:[%s253 + $0x74] sm:$0xf] %vm1169, %v1168
      %v1186 = vld [vmem:[%s258 + $0x8] sm:$0xf]
      %v1187 = vld [vmem:[%s258 + $0xc] sm:$0xf]
      %v1188 = vld [vmem:[%s258 + $0x1c] sm:$0xf]
      %v1189 = vld [vmem:[%s258 + $0x20] sm:$0xf]
      %v1190 = vld [vmem:[%s258 + $0x30] sm:$0xf]
      %v1191 = vld [vmem:[%s258 + $0x34] sm:$0xf]
      %v1192 = vld [vmem:[%s258 + $0x44] sm:$0xf]
      %v1193 = vld [vmem:[%s258 + $0x48] sm:$0xf]
      %v1194 = vld [vmem:[%s258 + $0x58] sm:$0xf]
      %v1195 = vld [vmem:[%s258 + $0x5c] sm:$0xf]
      %v1196 = vld [vmem:[%s258 + $0x6c] sm:$0xf]
      %v1197 = vld [vmem:[%s258 + $0x70] sm:$0xf]
      %v1198 = vld [vmem:[%s258 + $0x80] sm:$0xf]
      %v1199 = vld [vmem:[%s258 + $0x84] sm:$0xf]
      %v1200 = vld [vmem:[%s258 + $0x94] sm:$0xf]
      %v1201 = vld [vmem:[%s258 + $0x98] sm:$0xf]
      %v1202 = vunpack.c.l.bf16 %v1186
      %v1203 = vunpack.c.l.bf16 %v1187
      %v1204 = vunpack.c.l.bf16 %v1188
      %v1205 = vunpack.c.l.bf16 %v1189
      %v1206 = vunpack.c.l.bf16 %v1190
      %v1207 = vunpack.c.l.bf16 %v1191
      %v1208 = vunpack.c.l.bf16 %v1192
      %v1209 = vunpack.c.l.bf16 %v1193
      %v1210 = vunpack.c.l.bf16 %v1194
      %v1211 = vunpack.c.l.bf16 %v1195
      %v1212 = vunpack.c.l.bf16 %v1196
      %v1213 = vunpack.c.l.bf16 %v1197
      %v1214 = vunpack.c.l.bf16 %v1198
      %v1215 = vunpack.c.l.bf16 %v1199
      %v1216 = vunpack.c.l.bf16 %v1200
      %v1217 = vunpack.c.l.bf16 %v1201
      %v1218 = vld [vmem:[%s237] sm:$0x1]
      %v1220 = vperm.slane %v1218, 0
      %v1222 = vmul.f32 %v1202, %v1220
      %v1223 = vmul.f32 %v1203, %v1220
      %v1224 = vmul.f32 %v1204, %v1220
      %v1225 = vmul.f32 %v1205, %v1220
      %v1226 = vmul.f32 %v1206, %v1220
      %v1227 = vmul.f32 %v1207, %v1220
      %v1228 = vmul.f32 %v1208, %v1220
      %v1229 = vmul.f32 %v1209, %v1220
      %v1230 = vmul.f32 %v1210, %v1220
      %v1231 = vmul.f32 %v1211, %v1220
      %v1232 = vmul.f32 %v1212, %v1220
      %v1233 = vmul.f32 %v1213, %v1220
      %v1234 = vmul.f32 %v1214, %v1220
      %v1235 = vmul.f32 %v1215, %v1220
      %v1236 = vmul.f32 %v1216, %v1220
      %v1237 = vmul.f32 %v1217, %v1220
      %v1238 = vadd.f32 %v1222, 0.0
      %v1239 = vadd.f32 %v1223, 0.0
      %v1240 = vadd.f32 %v1224, 0.0
      %v1241 = vadd.f32 %v1225, 0.0
      %v1242 = vadd.f32 %v1226, 0.0
      %v1243 = vadd.f32 %v1227, 0.0
      %v1244 = vadd.f32 %v1228, 0.0
      %v1245 = vadd.f32 %v1229, 0.0
      %v1246 = vadd.f32 %v1230, 0.0
      %v1247 = vadd.f32 %v1231, 0.0
      %v1248 = vadd.f32 %v1232, 0.0
      %v1249 = vadd.f32 %v1233, 0.0
      %v1250 = vadd.f32 %v1234, 0.0
      %v1251 = vadd.f32 %v1235, 0.0
      %v1252 = vadd.f32 %v1236, 0.0
      %v1253 = vadd.f32 %v1237, 0.0
      %v1254 = vld [vmem:[%s329 + $0x8] sm:$0xf]
      %v1255 = vld [vmem:[%s329 + $0xc] sm:$0xf]
      %v1256 = vld [vmem:[%s329 + $0x1c] sm:$0xf]
      %v1257 = vld [vmem:[%s329 + $0x20] sm:$0xf]
      %v1258 = vld [vmem:[%s329 + $0x30] sm:$0xf]
      %v1259 = vld [vmem:[%s329 + $0x34] sm:$0xf]
      %v1260 = vld [vmem:[%s329 + $0x44] sm:$0xf]
      %v1261 = vld [vmem:[%s329 + $0x48] sm:$0xf]
      %v1262 = vld [vmem:[%s329 + $0x58] sm:$0xf]
      %v1263 = vld [vmem:[%s329 + $0x5c] sm:$0xf]
      %v1264 = vld [vmem:[%s329 + $0x6c] sm:$0xf]
      %v1265 = vld [vmem:[%s329 + $0x70] sm:$0xf]
      %v1266 = vld [vmem:[%s329 + $0x80] sm:$0xf]
      %v1267 = vld [vmem:[%s329 + $0x84] sm:$0xf]
      %v1268 = vld [vmem:[%s329 + $0x94] sm:$0xf]
      %v1269 = vld [vmem:[%s329 + $0x98] sm:$0xf]
      %v1270 = vunpack.c.l.bf16 %v1254
      %v1271 = vunpack.c.l.bf16 %v1255
      %v1272 = vunpack.c.l.bf16 %v1256
      %v1273 = vunpack.c.l.bf16 %v1257
      %v1274 = vunpack.c.l.bf16 %v1258
      %v1275 = vunpack.c.l.bf16 %v1259
      %v1276 = vunpack.c.l.bf16 %v1260
      %v1277 = vunpack.c.l.bf16 %v1261
      %v1278 = vunpack.c.l.bf16 %v1262
      %v1279 = vunpack.c.l.bf16 %v1263
      %v1280 = vunpack.c.l.bf16 %v1264
      %v1281 = vunpack.c.l.bf16 %v1265
      %v1282 = vunpack.c.l.bf16 %v1266
      %v1283 = vunpack.c.l.bf16 %v1267
      %v1284 = vunpack.c.l.bf16 %v1268
      %v1285 = vunpack.c.l.bf16 %v1269
      %v1286 = vld [vmem:[%s362] sm:$0x1]
      %v1288 = vperm.slane %v1286, 0
      %v1290 = vmul.f32 %v1270, %v1288
      %v1291 = vmul.f32 %v1271, %v1288
      %v1292 = vmul.f32 %v1272, %v1288
      %v1293 = vmul.f32 %v1273, %v1288
      %v1294 = vmul.f32 %v1274, %v1288
      %v1295 = vmul.f32 %v1275, %v1288
      %v1296 = vmul.f32 %v1276, %v1288
      %v1297 = vmul.f32 %v1277, %v1288
      %v1298 = vmul.f32 %v1278, %v1288
      %v1299 = vmul.f32 %v1279, %v1288
      %v1300 = vmul.f32 %v1280, %v1288
      %v1301 = vmul.f32 %v1281, %v1288
      %v1302 = vmul.f32 %v1282, %v1288
      %v1303 = vmul.f32 %v1283, %v1288
      %v1304 = vmul.f32 %v1284, %v1288
      %v1305 = vmul.f32 %v1285, %v1288
      %v1306 = vadd.f32 %v1238, %v1290
      %v1307 = vadd.f32 %v1239, %v1291
      %v1308 = vadd.f32 %v1240, %v1292
      %v1309 = vadd.f32 %v1241, %v1293
      %v1310 = vadd.f32 %v1242, %v1294
      %v1311 = vadd.f32 %v1243, %v1295
      %v1312 = vadd.f32 %v1244, %v1296
      %v1313 = vadd.f32 %v1245, %v1297
      %v1314 = vadd.f32 %v1246, %v1298
      %v1315 = vadd.f32 %v1247, %v1299
      %v1316 = vadd.f32 %v1248, %v1300
      %v1317 = vadd.f32 %v1249, %v1301
      %v1318 = vadd.f32 %v1250, %v1302
      %v1319 = vadd.f32 %v1251, %v1303
      %v1320 = vadd.f32 %v1252, %v1304
      %v1321 = vadd.f32 %v1253, %v1305
      %v1322 = vld [vmem:[%s258 + $0x10] sm:$0x1]
      %v1323 = vld [vmem:[%s258 + $0x24] sm:$0x1]
      %v1324 = vld [vmem:[%s258 + $0x38] sm:$0x1]
      %v1325 = vld [vmem:[%s258 + $0x4c] sm:$0x1]
      %v1326 = vld [vmem:[%s258 + $0x60] sm:$0x1]
      %v1327 = vld [vmem:[%s258 + $0x74] sm:$0x1]
      %v1328 = vld [vmem:[%s258 + $0x88] sm:$0x1]
      %v1329 = vld [vmem:[%s258 + $0x9c] sm:$0x1]
      %v1330 = vunpack.c.l.bf16 %v1322
      %v1331 = vunpack.c.l.bf16 %v1323
      %v1332 = vunpack.c.l.bf16 %v1324
      %v1333 = vunpack.c.l.bf16 %v1325
      %v1334 = vunpack.c.l.bf16 %v1326
      %v1335 = vunpack.c.l.bf16 %v1327
      %v1336 = vunpack.c.l.bf16 %v1328
      %v1337 = vunpack.c.l.bf16 %v1329
      %v1338 = vld [vmem:[%s415] sm:$0x1]
      %v1340 = vperm.slane %v1338, 0
      %v1342 = vmul.f32 %v1202, %v1340
      %v1343 = vmul.f32 %v1203, %v1340
      %v1344 = vmul.f32 %v1330, %v1340
      %v1345 = vmul.f32 %v1204, %v1340
      %v1346 = vmul.f32 %v1205, %v1340
      %v1347 = vmul.f32 %v1331, %v1340
      %v1348 = vmul.f32 %v1206, %v1340
      %v1349 = vmul.f32 %v1207, %v1340
      %v1350 = vmul.f32 %v1332, %v1340
      %v1351 = vmul.f32 %v1208, %v1340
      %v1352 = vmul.f32 %v1209, %v1340
      %v1353 = vmul.f32 %v1333, %v1340
      %v1354 = vmul.f32 %v1210, %v1340
      %v1355 = vmul.f32 %v1211, %v1340
      %v1356 = vmul.f32 %v1334, %v1340
      %v1357 = vmul.f32 %v1212, %v1340
      %v1358 = vmul.f32 %v1213, %v1340
      %v1359 = vmul.f32 %v1335, %v1340
      %v1360 = vmul.f32 %v1214, %v1340
      %v1361 = vmul.f32 %v1215, %v1340
      %v1362 = vmul.f32 %v1336, %v1340
      %v1363 = vmul.f32 %v1216, %v1340
      %v1364 = vmul.f32 %v1217, %v1340
      %v1365 = vmul.f32 %v1337, %v1340
      %v1390 = vrot.slane %v1342, 1
      %v1391 = vrot.slane %v1343, 1
      %v1392 = vsel %vm468, %v1390, %v1391
      %v1393 = vrot.slane %v1344, 1
      %v1394 = vsel %vm468, %v1391, %v1393
      %v1395 = vrot.slane %v1345, 1
      %v1396 = vrot.slane %v1346, 1
      %v1397 = vsel %vm468, %v1395, %v1396
      %v1398 = vrot.slane %v1347, 1
      %v1399 = vsel %vm468, %v1396, %v1398
      %v1400 = vrot.slane %v1348, 1
      %v1401 = vrot.slane %v1349, 1
      %v1402 = vsel %vm468, %v1400, %v1401
      %v1403 = vrot.slane %v1350, 1
      %v1404 = vsel %vm468, %v1401, %v1403
      %v1405 = vrot.slane %v1351, 1
      %v1406 = vrot.slane %v1352, 1
      %v1407 = vsel %vm468, %v1405, %v1406
      %v1408 = vrot.slane %v1353, 1
      %v1409 = vsel %vm468, %v1406, %v1408
      %v1410 = vrot.slane %v1354, 1
      %v1411 = vrot.slane %v1355, 1
      %v1412 = vsel %vm468, %v1410, %v1411
      %v1413 = vrot.slane %v1356, 1
      %v1414 = vsel %vm468, %v1411, %v1413
      %v1415 = vrot.slane %v1357, 1
      %v1416 = vrot.slane %v1358, 1
      %v1417 = vsel %vm468, %v1415, %v1416
      %v1418 = vrot.slane %v1359, 1
      %v1419 = vsel %vm468, %v1416, %v1418
      %v1420 = vrot.slane %v1360, 1
      %v1421 = vrot.slane %v1361, 1
      %v1422 = vsel %vm468, %v1420, %v1421
      %v1423 = vrot.slane %v1362, 1
      %v1424 = vsel %vm468, %v1421, %v1423
      %v1425 = vrot.slane %v1363, 1
      %v1426 = vrot.slane %v1364, 1
      %v1427 = vsel %vm468, %v1425, %v1426
      %v1428 = vrot.slane %v1365, 1
      %v1429 = vsel %vm468, %v1426, %v1428
      %v1446 = vadd.f32 %v1306, %v1392
      %v1447 = vadd.f32 %v1307, %v1394
      %v1448 = vadd.f32 %v1308, %v1397
      %v1449 = vadd.f32 %v1309, %v1399
      %v1450 = vadd.f32 %v1310, %v1402
      %v1451 = vadd.f32 %v1311, %v1404
      %v1452 = vadd.f32 %v1312, %v1407
      %v1453 = vadd.f32 %v1313, %v1409
      %v1454 = vadd.f32 %v1314, %v1412
      %v1455 = vadd.f32 %v1315, %v1414
      %v1456 = vadd.f32 %v1316, %v1417
      %v1457 = vadd.f32 %v1317, %v1419
      %v1458 = vadd.f32 %v1318, %v1422
      %v1459 = vadd.f32 %v1319, %v1424
      %v1460 = vadd.f32 %v1320, %v1427
      %v1461 = vadd.f32 %v1321, %v1429
      %v1462 = vld [vmem:[%s543 + $0x8] sm:$0xf]
      %v1463 = vld [vmem:[%s543 + $0xc] sm:$0xf]
      %v1464 = vld [vmem:[%s543 + $0x1c] sm:$0xf]
      %v1465 = vld [vmem:[%s543 + $0x20] sm:$0xf]
      %v1466 = vld [vmem:[%s543 + $0x30] sm:$0xf]
      %v1467 = vld [vmem:[%s543 + $0x34] sm:$0xf]
      %v1468 = vld [vmem:[%s543 + $0x44] sm:$0xf]
      %v1469 = vld [vmem:[%s543 + $0x48] sm:$0xf]
      %v1470 = vld [vmem:[%s543 + $0x58] sm:$0xf]
      %v1471 = vld [vmem:[%s543 + $0x5c] sm:$0xf]
      %v1472 = vld [vmem:[%s543 + $0x6c] sm:$0xf]
      %v1473 = vld [vmem:[%s543 + $0x70] sm:$0xf]
      %v1474 = vld [vmem:[%s543 + $0x80] sm:$0xf]
      %v1475 = vld [vmem:[%s543 + $0x84] sm:$0xf]
      %v1476 = vld [vmem:[%s543 + $0x94] sm:$0xf]
      %v1477 = vld [vmem:[%s543 + $0x98] sm:$0xf]
      %v1478 = vunpack.c.l.bf16 %v1462
      %v1479 = vunpack.c.l.bf16 %v1463
      %v1480 = vunpack.c.l.bf16 %v1464
      %v1481 = vunpack.c.l.bf16 %v1465
      %v1482 = vunpack.c.l.bf16 %v1466
      %v1483 = vunpack.c.l.bf16 %v1467
      %v1484 = vunpack.c.l.bf16 %v1468
      %v1485 = vunpack.c.l.bf16 %v1469
      %v1486 = vunpack.c.l.bf16 %v1470
      %v1487 = vunpack.c.l.bf16 %v1471
      %v1488 = vunpack.c.l.bf16 %v1472
      %v1489 = vunpack.c.l.bf16 %v1473
      %v1490 = vunpack.c.l.bf16 %v1474
      %v1491 = vunpack.c.l.bf16 %v1475
      %v1492 = vunpack.c.l.bf16 %v1476
      %v1493 = vunpack.c.l.bf16 %v1477
      %v1494 = vld [vmem:[%s576] sm:$0x1]
      %v1496 = vperm.slane %v1494, 0
      %v1498 = vmul.f32 %v1478, %v1496
      %v1499 = vmul.f32 %v1479, %v1496
      %v1500 = vmul.f32 %v1480, %v1496
      %v1501 = vmul.f32 %v1481, %v1496
      %v1502 = vmul.f32 %v1482, %v1496
      %v1503 = vmul.f32 %v1483, %v1496
      %v1504 = vmul.f32 %v1484, %v1496
      %v1505 = vmul.f32 %v1485, %v1496
      %v1506 = vmul.f32 %v1486, %v1496
      %v1507 = vmul.f32 %v1487, %v1496
      %v1508 = vmul.f32 %v1488, %v1496
      %v1509 = vmul.f32 %v1489, %v1496
      %v1510 = vmul.f32 %v1490, %v1496
      %v1511 = vmul.f32 %v1491, %v1496
      %v1512 = vmul.f32 %v1492, %v1496
      %v1513 = vmul.f32 %v1493, %v1496
      %v1514 = vadd.f32 %v1446, %v1498
      %v1515 = vadd.f32 %v1447, %v1499
      %v1516 = vadd.f32 %v1448, %v1500
      %v1517 = vadd.f32 %v1449, %v1501
      %v1518 = vadd.f32 %v1450, %v1502
      %v1519 = vadd.f32 %v1451, %v1503
      %v1520 = vadd.f32 %v1452, %v1504
      %v1521 = vadd.f32 %v1453, %v1505
      %v1522 = vadd.f32 %v1454, %v1506
      %v1523 = vadd.f32 %v1455, %v1507
      %v1524 = vadd.f32 %v1456, %v1508
      %v1525 = vadd.f32 %v1457, %v1509
      %v1526 = vadd.f32 %v1458, %v1510
      %v1527 = vadd.f32 %v1459, %v1511
      %v1528 = vadd.f32 %v1460, %v1512
      %v1529 = vadd.f32 %v1461, %v1513
      %v1530 = vld [vmem:[%s615 + $0x8] sm:$0xf]
      %v1531 = vld [vmem:[%s615 + $0xc] sm:$0xf]
      %v1532 = vld [vmem:[%s615 + $0x1c] sm:$0xf]
      %v1533 = vld [vmem:[%s615 + $0x20] sm:$0xf]
      %v1534 = vld [vmem:[%s615 + $0x30] sm:$0xf]
      %v1535 = vld [vmem:[%s615 + $0x34] sm:$0xf]
      %v1536 = vld [vmem:[%s615 + $0x44] sm:$0xf]
      %v1537 = vld [vmem:[%s615 + $0x48] sm:$0xf]
      %v1538 = vld [vmem:[%s615 + $0x58] sm:$0xf]
      %v1539 = vld [vmem:[%s615 + $0x5c] sm:$0xf]
      %v1540 = vld [vmem:[%s615 + $0x6c] sm:$0xf]
      %v1541 = vld [vmem:[%s615 + $0x70] sm:$0xf]
      %v1542 = vld [vmem:[%s615 + $0x80] sm:$0xf]
      %v1543 = vld [vmem:[%s615 + $0x84] sm:$0xf]
      %v1544 = vld [vmem:[%s615 + $0x94] sm:$0xf]
      %v1545 = vld [vmem:[%s615 + $0x98] sm:$0xf]
      %v1546 = vunpack.c.l.bf16 %v1530
      %v1547 = vunpack.c.l.bf16 %v1531
      %v1548 = vunpack.c.l.bf16 %v1532
      %v1549 = vunpack.c.l.bf16 %v1533
      %v1550 = vunpack.c.l.bf16 %v1534
      %v1551 = vunpack.c.l.bf16 %v1535
      %v1552 = vunpack.c.l.bf16 %v1536
      %v1553 = vunpack.c.l.bf16 %v1537
      %v1554 = vunpack.c.l.bf16 %v1538
      %v1555 = vunpack.c.l.bf16 %v1539
      %v1556 = vunpack.c.l.bf16 %v1540
      %v1557 = vunpack.c.l.bf16 %v1541
      %v1558 = vunpack.c.l.bf16 %v1542
      %v1559 = vunpack.c.l.bf16 %v1543
      %v1560 = vunpack.c.l.bf16 %v1544
      %v1561 = vunpack.c.l.bf16 %v1545
      %v1562 = vld [vmem:[%s648] sm:$0x1]
      %v1564 = vperm.slane %v1562, 0
      %v1566 = vmul.f32 %v1546, %v1564
      %v1567 = vmul.f32 %v1547, %v1564
      %v1568 = vmul.f32 %v1548, %v1564
      %v1569 = vmul.f32 %v1549, %v1564
      %v1570 = vmul.f32 %v1550, %v1564
      %v1571 = vmul.f32 %v1551, %v1564
      %v1572 = vmul.f32 %v1552, %v1564
      %v1573 = vmul.f32 %v1553, %v1564
      %v1574 = vmul.f32 %v1554, %v1564
      %v1575 = vmul.f32 %v1555, %v1564
      %v1576 = vmul.f32 %v1556, %v1564
      %v1577 = vmul.f32 %v1557, %v1564
      %v1578 = vmul.f32 %v1558, %v1564
      %v1579 = vmul.f32 %v1559, %v1564
      %v1580 = vmul.f32 %v1560, %v1564
      %v1581 = vmul.f32 %v1561, %v1564
      %v1582 = vadd.f32 %v1514, %v1566
      %v1583 = vadd.f32 %v1515, %v1567
      %v1584 = vadd.f32 %v1516, %v1568
      %v1585 = vadd.f32 %v1517, %v1569
      %v1586 = vadd.f32 %v1518, %v1570
      %v1587 = vadd.f32 %v1519, %v1571
      %v1588 = vadd.f32 %v1520, %v1572
      %v1589 = vadd.f32 %v1521, %v1573
      %v1590 = vadd.f32 %v1522, %v1574
      %v1591 = vadd.f32 %v1523, %v1575
      %v1592 = vadd.f32 %v1524, %v1576
      %v1593 = vadd.f32 %v1525, %v1577
      %v1594 = vadd.f32 %v1526, %v1578
      %v1595 = vadd.f32 %v1527, %v1579
      %v1596 = vadd.f32 %v1528, %v1580
      %v1597 = vadd.f32 %v1529, %v1581
      %v1598 = vld [vmem:[%s543 + $0x10] sm:$0x1]
      %v1599 = vld [vmem:[%s543 + $0x24] sm:$0x1]
      %v1600 = vld [vmem:[%s543 + $0x38] sm:$0x1]
      %v1601 = vld [vmem:[%s543 + $0x4c] sm:$0x1]
      %v1602 = vld [vmem:[%s543 + $0x60] sm:$0x1]
      %v1603 = vld [vmem:[%s543 + $0x74] sm:$0x1]
      %v1604 = vld [vmem:[%s543 + $0x88] sm:$0x1]
      %v1605 = vld [vmem:[%s543 + $0x9c] sm:$0x1]
      %v1606 = vunpack.c.l.bf16 %v1598
      %v1607 = vunpack.c.l.bf16 %v1599
      %v1608 = vunpack.c.l.bf16 %v1600
      %v1609 = vunpack.c.l.bf16 %v1601
      %v1610 = vunpack.c.l.bf16 %v1602
      %v1611 = vunpack.c.l.bf16 %v1603
      %v1612 = vunpack.c.l.bf16 %v1604
      %v1613 = vunpack.c.l.bf16 %v1605
      %v1614 = vld [vmem:[%s701] sm:$0x1]
      %v1616 = vperm.slane %v1614, 0
      %v1618 = vmul.f32 %v1478, %v1616
      %v1619 = vmul.f32 %v1479, %v1616
      %v1620 = vmul.f32 %v1606, %v1616
      %v1621 = vmul.f32 %v1480, %v1616
      %v1622 = vmul.f32 %v1481, %v1616
      %v1623 = vmul.f32 %v1607, %v1616
      %v1624 = vmul.f32 %v1482, %v1616
      %v1625 = vmul.f32 %v1483, %v1616
      %v1626 = vmul.f32 %v1608, %v1616
      %v1627 = vmul.f32 %v1484, %v1616
      %v1628 = vmul.f32 %v1485, %v1616
      %v1629 = vmul.f32 %v1609, %v1616
      %v1630 = vmul.f32 %v1486, %v1616
      %v1631 = vmul.f32 %v1487, %v1616
      %v1632 = vmul.f32 %v1610, %v1616
      %v1633 = vmul.f32 %v1488, %v1616
      %v1634 = vmul.f32 %v1489, %v1616
      %v1635 = vmul.f32 %v1611, %v1616
      %v1636 = vmul.f32 %v1490, %v1616
      %v1637 = vmul.f32 %v1491, %v1616
      %v1638 = vmul.f32 %v1612, %v1616
      %v1639 = vmul.f32 %v1492, %v1616
      %v1640 = vmul.f32 %v1493, %v1616
      %v1641 = vmul.f32 %v1613, %v1616
      %v1666 = vrot.slane %v1618, 1
      %v1667 = vrot.slane %v1619, 1
      %v1668 = vsel %vm468, %v1666, %v1667
      %v1669 = vrot.slane %v1620, 1
      %v1670 = vsel %vm468, %v1667, %v1669
      %v1671 = vrot.slane %v1621, 1
      %v1672 = vrot.slane %v1622, 1
      %v1673 = vsel %vm468, %v1671, %v1672
      %v1674 = vrot.slane %v1623, 1
      %v1675 = vsel %vm468, %v1672, %v1674
      %v1676 = vrot.slane %v1624, 1
      %v1677 = vrot.slane %v1625, 1
      %v1678 = vsel %vm468, %v1676, %v1677
      %v1679 = vrot.slane %v1626, 1
      %v1680 = vsel %vm468, %v1677, %v1679
      %v1681 = vrot.slane %v1627, 1
      %v1682 = vrot.slane %v1628, 1
      %v1683 = vsel %vm468, %v1681, %v1682
      %v1684 = vrot.slane %v1629, 1
      %v1685 = vsel %vm468, %v1682, %v1684
      %v1686 = vrot.slane %v1630, 1
      %v1687 = vrot.slane %v1631, 1
      %v1688 = vsel %vm468, %v1686, %v1687
      %v1689 = vrot.slane %v1632, 1
      %v1690 = vsel %vm468, %v1687, %v1689
      %v1691 = vrot.slane %v1633, 1
      %v1692 = vrot.slane %v1634, 1
      %v1693 = vsel %vm468, %v1691, %v1692
      %v1694 = vrot.slane %v1635, 1
      %v1695 = vsel %vm468, %v1692, %v1694
      %v1696 = vrot.slane %v1636, 1
      %v1697 = vrot.slane %v1637, 1
      %v1698 = vsel %vm468, %v1696, %v1697
      %v1699 = vrot.slane %v1638, 1
      %v1700 = vsel %vm468, %v1697, %v1699
      %v1701 = vrot.slane %v1639, 1
      %v1702 = vrot.slane %v1640, 1
      %v1703 = vsel %vm468, %v1701, %v1702
      %v1704 = vrot.slane %v1641, 1
      %v1705 = vsel %vm468, %v1702, %v1704
      %v1722 = vadd.f32 %v1582, %v1668
      %v1723 = vadd.f32 %v1583, %v1670
      %v1724 = vadd.f32 %v1584, %v1673
      %v1725 = vadd.f32 %v1585, %v1675
      %v1726 = vadd.f32 %v1586, %v1678
      %v1727 = vadd.f32 %v1587, %v1680
      %v1728 = vadd.f32 %v1588, %v1683
      %v1729 = vadd.f32 %v1589, %v1685
      %v1730 = vadd.f32 %v1590, %v1688
      %v1731 = vadd.f32 %v1591, %v1690
      %v1732 = vadd.f32 %v1592, %v1693
      %v1733 = vadd.f32 %v1593, %v1695
      %v1734 = vadd.f32 %v1594, %v1698
      %v1735 = vadd.f32 %v1595, %v1700
      %v1736 = vadd.f32 %v1596, %v1703
      %v1737 = vadd.f32 %v1597, %v1705
      %v1738 = vld [vmem:[%s829 + $0x8] sm:$0xf]
      %v1739 = vld [vmem:[%s829 + $0xc] sm:$0xf]
      %v1740 = vld [vmem:[%s829 + $0x1c] sm:$0xf]
      %v1741 = vld [vmem:[%s829 + $0x20] sm:$0xf]
      %v1742 = vld [vmem:[%s829 + $0x30] sm:$0xf]
      %v1743 = vld [vmem:[%s829 + $0x34] sm:$0xf]
      %v1744 = vld [vmem:[%s829 + $0x44] sm:$0xf]
      %v1745 = vld [vmem:[%s829 + $0x48] sm:$0xf]
      %v1746 = vld [vmem:[%s829 + $0x58] sm:$0xf]
      %v1747 = vld [vmem:[%s829 + $0x5c] sm:$0xf]
      %v1748 = vld [vmem:[%s829 + $0x6c] sm:$0xf]
      %v1749 = vld [vmem:[%s829 + $0x70] sm:$0xf]
      %v1750 = vld [vmem:[%s829 + $0x80] sm:$0xf]
      %v1751 = vld [vmem:[%s829 + $0x84] sm:$0xf]
      %v1752 = vld [vmem:[%s829 + $0x94] sm:$0xf]
      %v1753 = vld [vmem:[%s829 + $0x98] sm:$0xf]
      %v1754 = vunpack.c.l.bf16 %v1738
      %v1755 = vunpack.c.l.bf16 %v1739
      %v1756 = vunpack.c.l.bf16 %v1740
      %v1757 = vunpack.c.l.bf16 %v1741
      %v1758 = vunpack.c.l.bf16 %v1742
      %v1759 = vunpack.c.l.bf16 %v1743
      %v1760 = vunpack.c.l.bf16 %v1744
      %v1761 = vunpack.c.l.bf16 %v1745
      %v1762 = vunpack.c.l.bf16 %v1746
      %v1763 = vunpack.c.l.bf16 %v1747
      %v1764 = vunpack.c.l.bf16 %v1748
      %v1765 = vunpack.c.l.bf16 %v1749
      %v1766 = vunpack.c.l.bf16 %v1750
      %v1767 = vunpack.c.l.bf16 %v1751
      %v1768 = vunpack.c.l.bf16 %v1752
      %v1769 = vunpack.c.l.bf16 %v1753
      %v1770 = vld [vmem:[%s862] sm:$0x1]
      %v1772 = vperm.slane %v1770, 0
      %v1774 = vmul.f32 %v1754, %v1772
      %v1775 = vmul.f32 %v1755, %v1772
      %v1776 = vmul.f32 %v1756, %v1772
      %v1777 = vmul.f32 %v1757, %v1772
      %v1778 = vmul.f32 %v1758, %v1772
      %v1779 = vmul.f32 %v1759, %v1772
      %v1780 = vmul.f32 %v1760, %v1772
      %v1781 = vmul.f32 %v1761, %v1772
      %v1782 = vmul.f32 %v1762, %v1772
      %v1783 = vmul.f32 %v1763, %v1772
      %v1784 = vmul.f32 %v1764, %v1772
      %v1785 = vmul.f32 %v1765, %v1772
      %v1786 = vmul.f32 %v1766, %v1772
      %v1787 = vmul.f32 %v1767, %v1772
      %v1788 = vmul.f32 %v1768, %v1772
      %v1789 = vmul.f32 %v1769, %v1772
      %v1790 = vadd.f32 %v1722, %v1774
      %v1791 = vadd.f32 %v1723, %v1775
      %v1792 = vadd.f32 %v1724, %v1776
      %v1793 = vadd.f32 %v1725, %v1777
      %v1794 = vadd.f32 %v1726, %v1778
      %v1795 = vadd.f32 %v1727, %v1779
      %v1796 = vadd.f32 %v1728, %v1780
      %v1797 = vadd.f32 %v1729, %v1781
      %v1798 = vadd.f32 %v1730, %v1782
      %v1799 = vadd.f32 %v1731, %v1783
      %v1800 = vadd.f32 %v1732, %v1784
      %v1801 = vadd.f32 %v1733, %v1785
      %v1802 = vadd.f32 %v1734, %v1786
      %v1803 = vadd.f32 %v1735, %v1787
      %v1804 = vadd.f32 %v1736, %v1788
      %v1805 = vadd.f32 %v1737, %v1789
      %v1806 = vld [vmem:[%s901 + $0x8] sm:$0xf]
      %v1807 = vld [vmem:[%s901 + $0xc] sm:$0xf]
      %v1808 = vld [vmem:[%s901 + $0x1c] sm:$0xf]
      %v1809 = vld [vmem:[%s901 + $0x20] sm:$0xf]
      %v1810 = vld [vmem:[%s901 + $0x30] sm:$0xf]
      %v1811 = vld [vmem:[%s901 + $0x34] sm:$0xf]
      %v1812 = vld [vmem:[%s901 + $0x44] sm:$0xf]
      %v1813 = vld [vmem:[%s901 + $0x48] sm:$0xf]
      %v1814 = vld [vmem:[%s901 + $0x58] sm:$0xf]
      %v1815 = vld [vmem:[%s901 + $0x5c] sm:$0xf]
      %v1816 = vld [vmem:[%s901 + $0x6c] sm:$0xf]
      %v1817 = vld [vmem:[%s901 + $0x70] sm:$0xf]
      %v1818 = vld [vmem:[%s901 + $0x80] sm:$0xf]
      %v1819 = vld [vmem:[%s901 + $0x84] sm:$0xf]
      %v1820 = vld [vmem:[%s901 + $0x94] sm:$0xf]
      %v1821 = vld [vmem:[%s901 + $0x98] sm:$0xf]
      %v1822 = vunpack.c.l.bf16 %v1806
      %v1823 = vunpack.c.l.bf16 %v1807
      %v1824 = vunpack.c.l.bf16 %v1808
      %v1825 = vunpack.c.l.bf16 %v1809
      %v1826 = vunpack.c.l.bf16 %v1810
      %v1827 = vunpack.c.l.bf16 %v1811
      %v1828 = vunpack.c.l.bf16 %v1812
      %v1829 = vunpack.c.l.bf16 %v1813
      %v1830 = vunpack.c.l.bf16 %v1814
      %v1831 = vunpack.c.l.bf16 %v1815
      %v1832 = vunpack.c.l.bf16 %v1816
      %v1833 = vunpack.c.l.bf16 %v1817
      %v1834 = vunpack.c.l.bf16 %v1818
      %v1835 = vunpack.c.l.bf16 %v1819
      %v1836 = vunpack.c.l.bf16 %v1820
      %v1837 = vunpack.c.l.bf16 %v1821
      %v1838 = vld [vmem:[%s934] sm:$0x1]
      %v1840 = vperm.slane %v1838, 0
      %v1842 = vmul.f32 %v1822, %v1840
      %v1843 = vmul.f32 %v1823, %v1840
      %v1844 = vmul.f32 %v1824, %v1840
      %v1845 = vmul.f32 %v1825, %v1840
      %v1846 = vmul.f32 %v1826, %v1840
      %v1847 = vmul.f32 %v1827, %v1840
      %v1848 = vmul.f32 %v1828, %v1840
      %v1849 = vmul.f32 %v1829, %v1840
      %v1850 = vmul.f32 %v1830, %v1840
      %v1851 = vmul.f32 %v1831, %v1840
      %v1852 = vmul.f32 %v1832, %v1840
      %v1853 = vmul.f32 %v1833, %v1840
      %v1854 = vmul.f32 %v1834, %v1840
      %v1855 = vmul.f32 %v1835, %v1840
      %v1856 = vmul.f32 %v1836, %v1840
      %v1857 = vmul.f32 %v1837, %v1840
      %v1858 = vadd.f32 %v1790, %v1842
      %v1859 = vadd.f32 %v1791, %v1843
      %v1860 = vadd.f32 %v1792, %v1844
      %v1861 = vadd.f32 %v1793, %v1845
      %v1862 = vadd.f32 %v1794, %v1846
      %v1863 = vadd.f32 %v1795, %v1847
      %v1864 = vadd.f32 %v1796, %v1848
      %v1865 = vadd.f32 %v1797, %v1849
      %v1866 = vadd.f32 %v1798, %v1850
      %v1867 = vadd.f32 %v1799, %v1851
      %v1868 = vadd.f32 %v1800, %v1852
      %v1869 = vadd.f32 %v1801, %v1853
      %v1870 = vadd.f32 %v1802, %v1854
      %v1871 = vadd.f32 %v1803, %v1855
      %v1872 = vadd.f32 %v1804, %v1856
      %v1873 = vadd.f32 %v1805, %v1857
      %v1874 = vld [vmem:[%s829 + $0x10] sm:$0x1]
      %v1875 = vld [vmem:[%s829 + $0x24] sm:$0x1]
      %v1876 = vld [vmem:[%s829 + $0x38] sm:$0x1]
      %v1877 = vld [vmem:[%s829 + $0x4c] sm:$0x1]
      %v1878 = vld [vmem:[%s829 + $0x60] sm:$0x1]
      %v1879 = vld [vmem:[%s829 + $0x74] sm:$0x1]
      %v1880 = vld [vmem:[%s829 + $0x88] sm:$0x1]
      %v1881 = vld [vmem:[%s829 + $0x9c] sm:$0x1]
      %v1882 = vunpack.c.l.bf16 %v1874
      %v1883 = vunpack.c.l.bf16 %v1875
      %v1884 = vunpack.c.l.bf16 %v1876
      %v1885 = vunpack.c.l.bf16 %v1877
      %v1886 = vunpack.c.l.bf16 %v1878
      %v1887 = vunpack.c.l.bf16 %v1879
      %v1888 = vunpack.c.l.bf16 %v1880
      %v1889 = vunpack.c.l.bf16 %v1881
      %v1890 = vld [vmem:[%s987] sm:$0x1]
      %v1892 = vperm.slane %v1890, 0
      %v1894 = vmul.f32 %v1754, %v1892
      %v1895 = vmul.f32 %v1755, %v1892
      %v1896 = vmul.f32 %v1882, %v1892
      %v1897 = vmul.f32 %v1756, %v1892
      %v1898 = vmul.f32 %v1757, %v1892
      %v1899 = vmul.f32 %v1883, %v1892
      %v1900 = vmul.f32 %v1758, %v1892
      %v1901 = vmul.f32 %v1759, %v1892
      %v1902 = vmul.f32 %v1884, %v1892
      %v1903 = vmul.f32 %v1760, %v1892
      %v1904 = vmul.f32 %v1761, %v1892
      %v1905 = vmul.f32 %v1885, %v1892
      %v1906 = vmul.f32 %v1762, %v1892
      %v1907 = vmul.f32 %v1763, %v1892
      %v1908 = vmul.f32 %v1886, %v1892
      %v1909 = vmul.f32 %v1764, %v1892
      %v1910 = vmul.f32 %v1765, %v1892
      %v1911 = vmul.f32 %v1887, %v1892
      %v1912 = vmul.f32 %v1766, %v1892
      %v1913 = vmul.f32 %v1767, %v1892
      %v1914 = vmul.f32 %v1888, %v1892
      %v1915 = vmul.f32 %v1768, %v1892
      %v1916 = vmul.f32 %v1769, %v1892
      %v1917 = vmul.f32 %v1889, %v1892
      %v1942 = vrot.slane %v1894, 1
      %v1943 = vrot.slane %v1895, 1
      %v1944 = vsel %vm468, %v1942, %v1943
      %v1945 = vrot.slane %v1896, 1
      %v1946 = vsel %vm468, %v1943, %v1945
      %v1947 = vrot.slane %v1897, 1
      %v1948 = vrot.slane %v1898, 1
      %v1949 = vsel %vm468, %v1947, %v1948
      %v1950 = vrot.slane %v1899, 1
      %v1951 = vsel %vm468, %v1948, %v1950
      %v1952 = vrot.slane %v1900, 1
      %v1953 = vrot.slane %v1901, 1
      %v1954 = vsel %vm468, %v1952, %v1953
      %v1955 = vrot.slane %v1902, 1
      %v1956 = vsel %vm468, %v1953, %v1955
      %v1957 = vrot.slane %v1903, 1
      %v1958 = vrot.slane %v1904, 1
      %v1959 = vsel %vm468, %v1957, %v1958
      %v1960 = vrot.slane %v1905, 1
      %v1961 = vsel %vm468, %v1958, %v1960
      %v1962 = vrot.slane %v1906, 1
      %v1963 = vrot.slane %v1907, 1
      %v1964 = vsel %vm468, %v1962, %v1963
      %v1965 = vrot.slane %v1908, 1
      %v1966 = vsel %vm468, %v1963, %v1965
      %v1967 = vrot.slane %v1909, 1
      %v1968 = vrot.slane %v1910, 1
      %v1969 = vsel %vm468, %v1967, %v1968
      %v1970 = vrot.slane %v1911, 1
      %v1971 = vsel %vm468, %v1968, %v1970
      %v1972 = vrot.slane %v1912, 1
      %v1973 = vrot.slane %v1913, 1
      %v1974 = vsel %vm468, %v1972, %v1973
      %v1975 = vrot.slane %v1914, 1
      %v1976 = vsel %vm468, %v1973, %v1975
      %v1977 = vrot.slane %v1915, 1
      %v1978 = vrot.slane %v1916, 1
      %v1979 = vsel %vm468, %v1977, %v1978
      %v1980 = vrot.slane %v1917, 1
      %v1981 = vsel %vm468, %v1978, %v1980
      %v1998 = vadd.f32 %v1858, %v1944
      %v1999 = vadd.f32 %v1859, %v1946
      %v2000 = vadd.f32 %v1860, %v1949
      %v2001 = vadd.f32 %v1861, %v1951
      %v2002 = vadd.f32 %v1862, %v1954
      %v2003 = vadd.f32 %v1863, %v1956
      %v2004 = vadd.f32 %v1864, %v1959
      %v2005 = vadd.f32 %v1865, %v1961
      %v2006 = vadd.f32 %v1866, %v1964
      %v2007 = vadd.f32 %v1867, %v1966
      %v2008 = vadd.f32 %v1868, %v1969
      %v2009 = vadd.f32 %v1869, %v1971
      %v2010 = vadd.f32 %v1870, %v1974
      %v2011 = vadd.f32 %v1871, %v1976
      %v2012 = vadd.f32 %v1872, %v1979
      %v2013 = vadd.f32 %v1873, %v1981
      %v2014 = vld [vmem:[%s240] sm:$0x1]
      %v2016 = vperm.slane %v2014, 0
      %v2018 = vmul.f32 %v1998, %v2016
      %v2019 = vmul.f32 %v1999, %v2016
      %v2020 = vmul.f32 %v2000, %v2016
      %v2021 = vmul.f32 %v2001, %v2016
      %v2022 = vmul.f32 %v2002, %v2016
      %v2023 = vmul.f32 %v2003, %v2016
      %v2024 = vmul.f32 %v2004, %v2016
      %v2025 = vmul.f32 %v2005, %v2016
      %v2026 = vmul.f32 %v2006, %v2016
      %v2027 = vmul.f32 %v2007, %v2016
      %v2028 = vmul.f32 %v2008, %v2016
      %v2029 = vmul.f32 %v2009, %v2016
      %v2030 = vmul.f32 %v2010, %v2016
      %v2031 = vmul.f32 %v2011, %v2016
      %v2032 = vmul.f32 %v2012, %v2016
      %v2033 = vmul.f32 %v2013, %v2016
      %v2034 = vld [vmem:[%s1132] sm:$0x1]
      %v2036 = vperm.slane %v2034, 0
      %v2038 = vadd.f32 %v2018, %v2036
      %v2039 = vadd.f32 %v2019, %v2036
      %v2040 = vadd.f32 %v2020, %v2036
      %v2041 = vadd.f32 %v2021, %v2036
      %v2042 = vadd.f32 %v2022, %v2036
      %v2043 = vadd.f32 %v2023, %v2036
      %v2044 = vadd.f32 %v2024, %v2036
      %v2045 = vadd.f32 %v2025, %v2036
      %v2046 = vadd.f32 %v2026, %v2036
      %v2047 = vadd.f32 %v2027, %v2036
      %v2048 = vadd.f32 %v2028, %v2036
      %v2049 = vadd.f32 %v2029, %v2036
      %v2050 = vadd.f32 %v2030, %v2036
      %v2051 = vadd.f32 %v2031, %v2036
      %v2052 = vadd.f32 %v2032, %v2036
      %v2053 = vadd.f32 %v2033, %v2036
      %v2054 = vpack.c.bf16 %v2038, %v2038
      %v2055 = vpack.c.bf16 %v2039, %v2039
      %v2056 = vpack.c.bf16 %v2040, %v2040
      %v2057 = vpack.c.bf16 %v2041, %v2041
      %v2058 = vpack.c.bf16 %v2042, %v2042
      %v2059 = vpack.c.bf16 %v2043, %v2043
      %v2060 = vpack.c.bf16 %v2044, %v2044
      %v2061 = vpack.c.bf16 %v2045, %v2045
      %v2062 = vpack.c.bf16 %v2046, %v2046
      %v2063 = vpack.c.bf16 %v2047, %v2047
      %v2064 = vpack.c.bf16 %v2048, %v2048
      %v2065 = vpack.c.bf16 %v2049, %v2049
      %v2066 = vpack.c.bf16 %v2050, %v2050
      %v2067 = vpack.c.bf16 %v2051, %v2051
      %v2068 = vpack.c.bf16 %v2052, %v2052
      %v2069 = vpack.c.bf16 %v2053, %v2053
      %2070 = vst.msk [vmem:[%s253 + $0x8] sm:$0xf] %vm1169, %v2054
      %2071 = vst.msk [vmem:[%s253 + $0xc] sm:$0xf] %vm1169, %v2055
      %2072 = vst.msk [vmem:[%s253 + $0x18] sm:$0xf] %vm1169, %v2056
      %2073 = vst.msk [vmem:[%s253 + $0x1c] sm:$0xf] %vm1169, %v2057
      %2074 = vst.msk [vmem:[%s253 + $0x28] sm:$0xf] %vm1169, %v2058
      %2075 = vst.msk [vmem:[%s253 + $0x2c] sm:$0xf] %vm1169, %v2059
      %2076 = vst.msk [vmem:[%s253 + $0x38] sm:$0xf] %vm1169, %v2060
      %2077 = vst.msk [vmem:[%s253 + $0x3c] sm:$0xf] %vm1169, %v2061
      %2078 = vst.msk [vmem:[%s253 + $0x48] sm:$0xf] %vm1169, %v2062
      %2079 = vst.msk [vmem:[%s253 + $0x4c] sm:$0xf] %vm1169, %v2063
      %2080 = vst.msk [vmem:[%s253 + $0x58] sm:$0xf] %vm1169, %v2064
      %2081 = vst.msk [vmem:[%s253 + $0x5c] sm:$0xf] %vm1169, %v2065
      %2082 = vst.msk [vmem:[%s253 + $0x68] sm:$0xf] %vm1169, %v2066
      %2083 = vst.msk [vmem:[%s253 + $0x6c] sm:$0xf] %vm1169, %v2067
      %2084 = vst.msk [vmem:[%s253 + $0x78] sm:$0xf] %vm1169, %v2068
      %2085 = vst.msk [vmem:[%s253 + $0x7c] sm:$0xf] %vm1169, %v2069
      %s2086 = smul.u32 8, %s21
      %p2087 = scmp.lt.s32.totalorder %s19, 1
      %s2088 = scalar_select %p2087, %s19, 1
      %p2089 = scmp.lt.s32.totalorder %s2086, 31
      %s2090 = scalar_select %p2089, %s2086, 31
      %p2091 = scmp.lt.s32.totalorder %s20, 0
      %s2092 = scalar_select %p2091, %s20, 0
      %s2093 = smul.addr %s2090, 4
      %s2094 = sadd.s32 %s2092, %s2093
      %s2095 = smul.addr %s2088, 128
      %s2096 = sadd.s32 %s2094, %s2095
      %s2097 = smul.addr %s2096, 4
      %s2098 = scalar_lea.vmem %s3, %s2097
      // Predicated region
      $region33: #{tpu_custom_call.1} parent=31 // pred_check
        %p2099 = pneg %p135
      $region34: #{tpu_custom_call.1} parent=31 // pred_check_branch
        %2101 = sbr.rel (%p2099) target = $region36
      $region35: #{tpu_custom_call.1} parent=31 // pred_region
        %s2102 = smul.u32 8, %s21
      $region36: #{tpu_custom_call.1} parent=31 // pred_fallthru
        _
    $region32: #{tpu_custom_call.1} parent=5 // pred_fallthru
      _
    %p2103 = scmp.le.s32.totalorder 2, %s9
    // Predicated region
    $region37: #{tpu_custom_call.1} parent=5 // pred_check
      %p2104 = pneg %p2103
    $region38: #{tpu_custom_call.1} parent=5 // pred_check_branch
      %2106 = sbr.rel (%p2104) target = $region40
    $region39: #{tpu_custom_call.1} parent=5 // pred_region
      %s2107 = ssub.s32 %s9, 2
      // Predicated region
      $region41: #{tpu_custom_call.1} parent=39 // pred_check
        %p2108 = pneg %p141
      $region42: #{tpu_custom_call.1} parent=39 // pred_check_branch
        %2110 = sbr.rel (%p2108) target = $region44
      $region43: #{tpu_custom_call.1} parent=39 // pred_region
        %s2111 = smul.u32 8, %s24
        %p2112 = scmp.lt.s32.totalorder %s22, 1
        %s2113 = scalar_select %p2112, %s22, 1
        %p2114 = scmp.lt.s32.totalorder %s2111, 31
        %s2115 = scalar_select %p2114, %s2111, 31
        %p2116 = scmp.lt.s32.totalorder %s23, 0
        %s2117 = scalar_select %p2116, %s23, 0
        %s2118 = smul.addr %s2115, 4
        %s2119 = sadd.s32 %s2117, %s2118
        %s2120 = smul.addr %s2113, 128
        %s2121 = sadd.s32 %s2119, %s2120
        %s2122 = smul.addr %s2121, 4
        %s2123 = scalar_lea.vmem %s3, %s2122
      $region44: #{tpu_custom_call.1} parent=39 // pred_fallthru
        _
    $region40: #{tpu_custom_call.1} parent=5 // pred_fallthru
      _
  $region6: #{tpu_custom_call.1} parent=0 // loop_footer
    %s13 = sadd.s32 1, %s9
  $region7: #{tpu_custom_call.1} parent=0 // loop_footer_branch
    %8 = sbr.rel target = $region3
  $region8: #{tpu_custom_call.1} parent=0 // loop_exit
    _

</llo_original>
